<compile_context>
chip_gen: v6e
topology: v6e:2x2x1
jax: 0.10.0
libtpu: 0.0.40
codegen_flags: <defaults>
</compile_context>

<pallas_src>
import math

import jax
import jax.numpy as jnp
from jax import lax
from jax.experimental import pallas as pl
from jax.experimental.pallas import tpu as pltpu

_SQRT_HALF = 1.0 / math.sqrt(2.0)


def _gelu(x, approximate=False):
    if approximate:
        # tanh-approx GELU lowers to the EUP slot (VPU relief); differs from
        # PyTorch's exact erf GELU by ~1e-3 absolute.
        return jax.nn.gelu(x, approximate=True)
    # PyTorch nn.GELU() default = exact erf-based GELU (computed in f32).
    return 0.5 * x * (1.0 + lax.erf(x * _SQRT_HALF))


def _make_dino_head_kernel(wl_resident, approx_gelu):
    def kernel(x_ref, w1_ref, b1_ref, w2_ref, b2_ref, w3_ref, b3_ref,
               wl_ref, o_ref, z_ref):
        # grid = (batch tiles i, out_dim tiles j); j is the inner ("arbitrary") axis.
        j = pl.program_id(1)

        # Run the 3-layer MLP + L2 normalize only ONCE per batch tile; the result
        # lives in the persistent VMEM scratch z_ref across the out_dim sweep.
        @pl.when(j == 0)
        def _():
            cd = w1_ref.dtype                       # bf16 compute dtype for the MXU
            x = x_ref[...]                          # already bf16 (cast in wrapper)

            h = jnp.dot(x, w1_ref[...], preferred_element_type=jnp.float32) + b1_ref[...]
            h = _gelu(h, approx_gelu)

            h = jnp.dot(h.astype(cd), w2_ref[...],
                        preferred_element_type=jnp.float32) + b2_ref[...]
            h = _gelu(h, approx_gelu)

            z = jnp.dot(h.astype(cd), w3_ref[...],
                        preferred_element_type=jnp.float32) + b3_ref[...]

            # F.normalize(z, dim=-1, p=2, eps=1e-12) == z * rsqrt(max(sum(z^2), eps^2))
            ss = jnp.sum(z * z, axis=-1, keepdims=True)
            z = z * lax.rsqrt(jnp.maximum(ss, 1e-24))
            z_ref[...] = z.astype(z_ref.dtype)

        # Weight-normed last linear (no bias, weight_g == 1): one out_dim tile.
        if wl_resident:
            wl = wl_ref[j]          # (bottleneck, tn) slab of VMEM-resident weight
        else:
            wl = wl_ref[...]        # streamed (bottleneck, tn) tile
        o_ref[...] = jnp.dot(z_ref[...], wl,
                             preferred_element_type=jnp.float32).astype(o_ref.dtype)

    return kernel


def _vmem_capacity_bytes():
    try:
        return int(pltpu.get_tpu_info().vmem_capacity_bytes)
    except Exception:
        return 64 * 1024 * 1024   # conservative (v7x-sized) fallback


def dino_head_forward(x, params, *, tm=256, tn=1024, out_dtype=jnp.float32,
                      approx_gelu=False, resident_w_last="auto",
                      vmem_limit_bytes=None, use_pipeline_modes=True):
    """x: (N, in_dim) float. params: dict of weights in (in, out) layout."""
    n, in_dim = x.shape
    hidden = params["w1"].shape[1]
    bottleneck = params["w3"].shape[1]
    out_dim = params["w_last"].shape[1]
    wdt = params["w1"].dtype
    wbytes = jnp.dtype(wdt).itemsize
    obytes = jnp.dtype(out_dtype).itemsize

    # Halve the x DMA + its double-buffered VMEM footprint (free; matmul is bf16 anyway).
    x = x.astype(wdt)

    tm = min(tm, n)
    # v7x megacore: keep >= 2 batch tiles so both TensorCores get work.
    if n >= 256 and pl.cdiv(n, tm) < 2:
        tm = (((n + 1) // 2 + 7) // 8) * 8
    tn = min(tn, out_dim)

    num_i = pl.cdiv(n, tm)
    num_j = pl.cdiv(out_dim, tn)
    # NOTE: if n % tm != 0 or out_dim % tn != 0, padded rows/cols flow through
    # GELU/rsqrt on block padding; the garbage is discarded on writeback.

    # ---- VMEM budget (Buffered(1) residents, streamed or resident w_last) ----
    mlp_resident_bytes = sum(int(params[k].nbytes)
                             for k in ("w1", "b1", "w2", "b2", "w3", "b3"))
    w_last_bytes = int(params["w_last"].nbytes)
    wl_stream_bufs = 3                                    # hide the long j==0 MLP step
    x_tile = tm * in_dim * wbytes * 2                     # double buffered
    out_tile = tm * tn * obytes * 2                       # double buffered
    z_scratch = tm * bottleneck * wbytes
    h_tmp = 3 * tm * hidden * 4                           # f32 temporaries in j==0 step
    base = mlp_resident_bytes + x_tile + out_tile + z_scratch + h_tmp
    stream_need = base + wl_stream_bufs * bottleneck * tn * wbytes
    resident_need = base + w_last_bytes

    vmem_cap = _vmem_capacity_bytes()
    if resident_w_last == "auto":
        # Hold w_last entirely on-chip (read from HBM exactly once) when it fits
        # comfortably: typically true on v5e/v6e (128 MiB VMEM), not on v7x (64 MiB).
        resident_w_last = (out_dim % tn == 0) and (resident_need <= int(0.70 * vmem_cap))
    elif resident_w_last and out_dim % tn != 0:
        resident_w_last = False  # TODO(synk): pad out_dim to a tile multiple to allow residency

    if vmem_limit_bytes is None:
        need = resident_need if resident_w_last else stream_need
        vmem_limit_bytes = min(int(need * 1.25) + (8 << 20), int(vmem_cap * 0.9))
        vmem_limit_bytes = max(vmem_limit_bytes, 32 << 20)

    # ---- BlockSpecs ----
    buffered = getattr(pl, "Buffered", None)

    def mode(k):
        if use_pipeline_modes and buffered is not None:
            return {"pipeline_mode": buffered(k)}
        return {}

    def resident(a):
        # Constant index_map -> fetched once; Buffered(1) kills the useless 2nd buffer.
        return pl.BlockSpec(a.shape, lambda i, j: (0,) * a.ndim, **mode(1))

    in_specs = [
        pl.BlockSpec((tm, in_dim), lambda i, j: (i, 0)),   # x: streamed per batch tile
        resident(params["w1"]), resident(params["b1"]),
        resident(params["w2"]), resident(params["b2"]),
        resident(params["w3"]), resident(params["b3"]),
    ]

    if resident_w_last:
        # (bottleneck, out_dim) -> (num_j, bottleneck, tn): leading axis selects the
        # output tile inside the kernel (cheap leading-axis dynamic index).
        # TODO(synk): in a training loop, precompute this layout once instead of per call.
        wl = params["w_last"].reshape(bottleneck, num_j, tn).transpose(1, 0, 2)
        in_specs.append(resident(wl))
    else:
        wl = params["w_last"]
        in_specs.append(
            pl.BlockSpec((bottleneck, tn), lambda i, j: (0, j), **mode(wl_stream_bufs)))

    out_specs = pl.BlockSpec((tm, tn), lambda i, j: (i, j))

    # ---- cost estimate (advisory; reflect real HBM traffic) ----
    flops = 2 * n * (in_dim * hidden + hidden * hidden
                     + hidden * bottleneck + bottleneck * out_dim)
    wl_traffic = w_last_bytes if resident_w_last else num_i * w_last_bytes
    bytes_accessed = int(x.nbytes) + mlp_resident_bytes + wl_traffic + n * out_dim * obytes
    cost = pl.CostEstimate(flops=flops, transcendentals=2 * n * hidden,
                           bytes_accessed=bytes_accessed)

    kernel = _make_dino_head_kernel(resident_w_last, approx_gelu)
    return pl.pallas_call(
        kernel,
        out_shape=jax.ShapeDtypeStruct((n, out_dim), out_dtype),
        grid_spec=pltpu.PrefetchScalarGridSpec(
            num_scalar_prefetch=0,
            grid=(num_i, num_j),
            in_specs=in_specs,
            out_specs=out_specs,
            # persistent bottleneck activation for the current batch tile
            scratch_shapes=[pltpu.VMEM((tm, bottleneck), wdt)],
        ),
        compiler_params=pltpu.CompilerParams(
            dimension_semantics=("parallel", "arbitrary"),
            vmem_limit_bytes=int(vmem_limit_bytes),
        ),
        cost_estimate=cost,
    )(x, params["w1"], params["b1"], params["w2"], params["b2"],
      params["w3"], params["b3"], wl)


def _trunc_normal(key, shape, std=0.02):
    # matches trunc_normal_(w, std=0.02): truncated to +/- 2 std
    return std * jax.random.truncated_normal(key, -2.0, 2.0, shape, jnp.float32)


def init_dino_head_params(key, in_dim, out_dim, hidden_dim, bottleneck_dim,
                          param_dtype=jnp.bfloat16):
    k1, k2, k3, k4 = jax.random.split(key, 4)
    # MLP linear layers: trunc_normal(std=0.02) weights, zero biases.
    w1 = _trunc_normal(k1, (in_dim, hidden_dim)).astype(param_dtype)
    b1 = jnp.zeros((1, hidden_dim), jnp.float32)
    w2 = _trunc_normal(k2, (hidden_dim, hidden_dim)).astype(param_dtype)
    b2 = jnp.zeros((1, hidden_dim), jnp.float32)
    w3 = _trunc_normal(k3, (hidden_dim, bottleneck_dim)).astype(param_dtype)
    b3 = jnp.zeros((1, bottleneck_dim), jnp.float32)
    # Last layer weight_v (PyTorch layout (out_dim, bottleneck)); with weight_g = 1
    # and norm_last_layer=True (weight_g frozen), effective weight = v / ||v||_row.
    # Stored transposed as (bottleneck, out_dim).
    # TODO(synk): if norm_last_layer=False (trainable weight_g), re-apply the
    # row normalization / scale per forward instead of baking it in at init.
    v = _trunc_normal(k4, (out_dim, bottleneck_dim))
    v_rownorm = jnp.sqrt(jnp.sum(v * v, axis=1, keepdims=True))
    w_last = (v / jnp.maximum(v_rownorm, 1e-12)).T.astype(param_dtype)
    return {"w1": w1, "b1": b1, "w2": w2, "b2": b2, "w3": w3, "b3": b3,
            "w_last": w_last}


def dino_head_reference(x, p):
    """Pure-JAX reference following the same bf16-input / f32-accumulate path."""
    cd = p["w1"].dtype
    h = _gelu(jnp.dot(x.astype(cd), p["w1"],
                      preferred_element_type=jnp.float32) + p["b1"])
    h = _gelu(jnp.dot(h.astype(cd), p["w2"],
                      preferred_element_type=jnp.float32) + p["b2"])
    z = jnp.dot(h.astype(cd), p["w3"],
                preferred_element_type=jnp.float32) + p["b3"]
    z = z * lax.rsqrt(jnp.maximum(jnp.sum(z * z, axis=-1, keepdims=True), 1e-24))
    return jnp.dot(z.astype(cd), p["w_last"], preferred_element_type=jnp.float32)


if __name__ == "__main__":
    # Small but tile-friendly shapes (all dims multiples of 128 -> lane-dense
    # stores and a real 2x2 grid): batch=256, in_dim=128, hidden=256,
    # bottleneck=128, out_dim=512.  Production defaults are tm=256, tn=1024.
    N, IN_DIM, HIDDEN, BOTTLENECK, OUT_DIM = 256, 128, 256, 128, 512

    key = jax.random.PRNGKey(0)
    kx, kp = jax.random.split(key)
    x = jax.random.normal(kx, (N, IN_DIM), jnp.float32)
    params = init_dino_head_params(kp, IN_DIM, OUT_DIM, HIDDEN, BOTTLENECK,
                                   param_dtype=jnp.bfloat16)

    ref = dino_head_reference(x, params)

    def run(**kw):
        try:
            return jax.block_until_ready(dino_head_forward(x, params, **kw))
        except Exception:
            # Fallback for jax versions where pipeline_mode=pl.Buffered(...) is
            # not supported on pallas_call BlockSpecs.
            return jax.block_until_ready(
                dino_head_forward(x, params, use_pipeline_modes=False, **kw))

    # Streamed w_last path (what v7x / very large out_dim uses).
    out_stream = run(tn=256, resident_w_last=False)
    # Fully VMEM-resident w_last path (what v5e/v6e uses when it fits).
    out_res = run(tn=256, resident_w_last=True)

    for out in (out_stream, out_res):
        assert out.shape == (N, OUT_DIM)
        max_err = float(jnp.max(jnp.abs(out - ref)))
        assert jnp.allclose(out, ref, atol=2e-3, rtol=2e-3), \
            f"mismatch vs reference (max abs err {max_err})"

    print("KERNEL_OK")
</pallas_src>

<mosaic_0001>
module attributes {stable_mosaic.version = 11 : i64} {
  func.func @kernel(%arg0: i32, %arg1: i32, %arg2: memref<128x128xbf16, #tpu.memory_space<vmem>>, %arg3: memref<128x256xbf16, #tpu.memory_space<vmem>>, %arg4: memref<1x256xf32, #tpu.memory_space<vmem>>, %arg5: memref<256x256xbf16, #tpu.memory_space<vmem>>, %arg6: memref<1x256xf32, #tpu.memory_space<vmem>>, %arg7: memref<256x128xbf16, #tpu.memory_space<vmem>>, %arg8: memref<1x128xf32, #tpu.memory_space<vmem>>, %arg9: memref<128x256xbf16, #tpu.memory_space<vmem>>, %arg10: memref<128x256xf32, #tpu.memory_space<vmem>>, %arg11: memref<128x128xbf16, #tpu.memory_space<vmem>>) attributes {dimension_semantics = [#tpu.dimension_semantics<parallel>, #tpu.dimension_semantics<arbitrary>], iteration_bounds = array<i64: 2, 2>, scalar_prefetch = 0 : i64, scratch_operands = 1 : i64, tpu.core_type = #tpu.core_type<tc>, window_params = [{transform_indices = @transform_0, window_bounds = array<i64: 128, 128>}, {pipeline_mode = #tpu.pipeline_mode<synchronous>, transform_indices = @transform_1, window_bounds = array<i64: 128, 256>}, {pipeline_mode = #tpu.pipeline_mode<synchronous>, transform_indices = @transform_2, window_bounds = array<i64: 1, 256>}, {pipeline_mode = #tpu.pipeline_mode<synchronous>, transform_indices = @transform_3, window_bounds = array<i64: 256, 256>}, {pipeline_mode = #tpu.pipeline_mode<synchronous>, transform_indices = @transform_4, window_bounds = array<i64: 1, 256>}, {pipeline_mode = #tpu.pipeline_mode<synchronous>, transform_indices = @transform_5, window_bounds = array<i64: 256, 128>}, {pipeline_mode = #tpu.pipeline_mode<synchronous>, transform_indices = @transform_6, window_bounds = array<i64: 1, 128>}, {transform_indices = @transform_7, window_bounds = array<i64: 128, 256>}, {transform_indices = @transform_8, window_bounds = array<i64: 128, 256>}]} {
    %c0_i32 = arith.constant 0 : i32
    %0 = arith.cmpi eq, %arg1, %c0_i32 : i32
    %1 = arith.extui %0 : i1 to i32
    %c0_i32_0 = arith.constant 0 : i32
    %2 = arith.cmpi ne, %1, %c0_i32_0 : i32
    scf.if %2 {
      %c0_6 = arith.constant 0 : index
      %c0_7 = arith.constant 0 : index
      %7 = vector.load %arg2[%c0_6, %c0_7] : memref<128x128xbf16, #tpu.memory_space<vmem>>, vector<128x128xbf16>
      %c0_8 = arith.constant 0 : index
      %c0_9 = arith.constant 0 : index
      %8 = vector.load %arg3[%c0_8, %c0_9] : memref<128x256xbf16, #tpu.memory_space<vmem>>, vector<128x256xbf16>
      %cst_10 = arith.constant dense<0.000000e+00> : vector<128x256xf32>
      %9 = tpu.matmul %7, %8, %cst_10 {dimension_numbers = #tpu.dot_dimension_numbers<[1], [0], [0], [1], [0, 0, 1, 1], [], []>} : vector<128x128xbf16>, vector<128x256xbf16>, vector<128x256xf32> -> vector<128x256xf32>
      %c0_11 = arith.constant 0 : index
      %c0_12 = arith.constant 0 : index
      %10 = vector.load %arg4[%c0_11, %c0_12] : memref<1x256xf32, #tpu.memory_space<vmem>>, vector<1x256xf32>
      %11 = vector.broadcast %10 : vector<1x256xf32> to vector<128x256xf32>
      %12 = arith.addf %9, %11 : vector<128x256xf32>
      %cst_13 = arith.constant 5.000000e-01 : f32
      %13 = vector.broadcast %cst_13 : f32 to vector<128x256xf32>
      %14 = arith.mulf %13, %12 : vector<128x256xf32>
      %cst_14 = arith.constant 0.707106769 : f32
      %15 = vector.broadcast %cst_14 : f32 to vector<128x256xf32>
      %16 = arith.mulf %12, %15 : vector<128x256xf32>
      %17 = math.erf %16 : vector<128x256xf32>
      %cst_15 = arith.constant 1.000000e+00 : f32
      %18 = vector.broadcast %cst_15 : f32 to vector<128x256xf32>
      %19 = arith.addf %18, %17 : vector<128x256xf32>
      %20 = arith.mulf %14, %19 : vector<128x256xf32>
      %21 = arith.truncf %20 : vector<128x256xf32> to vector<128x256xbf16>
      %c0_16 = arith.constant 0 : index
      %c0_17 = arith.constant 0 : index
      %22 = vector.load %arg5[%c0_16, %c0_17] : memref<256x256xbf16, #tpu.memory_space<vmem>>, vector<256x256xbf16>
      %cst_18 = arith.constant dense<0.000000e+00> : vector<128x256xf32>
      %23 = tpu.matmul %21, %22, %cst_18 {dimension_numbers = #tpu.dot_dimension_numbers<[1], [0], [0], [1], [0, 0, 1, 1], [], []>} : vector<128x256xbf16>, vector<256x256xbf16>, vector<128x256xf32> -> vector<128x256xf32>
      %c0_19 = arith.constant 0 : index
      %c0_20 = arith.constant 0 : index
      %24 = vector.load %arg6[%c0_19, %c0_20] : memref<1x256xf32, #tpu.memory_space<vmem>>, vector<1x256xf32>
      %25 = vector.broadcast %24 : vector<1x256xf32> to vector<128x256xf32>
      %26 = arith.addf %23, %25 : vector<128x256xf32>
      %cst_21 = arith.constant 5.000000e-01 : f32
      %27 = vector.broadcast %cst_21 : f32 to vector<128x256xf32>
      %28 = arith.mulf %27, %26 : vector<128x256xf32>
      %cst_22 = arith.constant 0.707106769 : f32
      %29 = vector.broadcast %cst_22 : f32 to vector<128x256xf32>
      %30 = arith.mulf %26, %29 : vector<128x256xf32>
      %31 = math.erf %30 : vector<128x256xf32>
      %cst_23 = arith.constant 1.000000e+00 : f32
      %32 = vector.broadcast %cst_23 : f32 to vector<128x256xf32>
      %33 = arith.addf %32, %31 : vector<128x256xf32>
      %34 = arith.mulf %28, %33 : vector<128x256xf32>
      %35 = arith.truncf %34 : vector<128x256xf32> to vector<128x256xbf16>
      %c0_24 = arith.constant 0 : index
      %c0_25 = arith.constant 0 : index
      %36 = vector.load %arg7[%c0_24, %c0_25] : memref<256x128xbf16, #tpu.memory_space<vmem>>, vector<256x128xbf16>
      %cst_26 = arith.constant dense<0.000000e+00> : vector<128x128xf32>
      %37 = tpu.matmul %35, %36, %cst_26 {dimension_numbers = #tpu.dot_dimension_numbers<[1], [0], [0], [1], [0, 0, 1, 1], [], []>} : vector<128x256xbf16>, vector<256x128xbf16>, vector<128x128xf32> -> vector<128x128xf32>
      %c0_27 = arith.constant 0 : index
      %c0_28 = arith.constant 0 : index
      %38 = vector.load %arg8[%c0_27, %c0_28] : memref<1x128xf32, #tpu.memory_space<vmem>>, vector<1x128xf32>
      %39 = vector.broadcast %38 : vector<1x128xf32> to vector<128x128xf32>
      %40 = arith.addf %37, %39 : vector<128x128xf32>
      %41 = arith.mulf %40, %40 : vector<128x128xf32>
      %cst_29 = arith.constant dense<0.000000e+00> : vector<128xf32>
      %42 = vector.multi_reduction <add>, %41, %cst_29 [1] : vector<128x128xf32> to vector<128xf32>
      %43 = vector.shape_cast %42 : vector<128xf32> to vector<128x1xf32>
      %cst_30 = arith.constant 1.000000e-24 : f32
      %44 = vector.broadcast %cst_30 : f32 to vector<128x1xf32>
      %45 = arith.maximumf %43, %44 : vector<128x1xf32>
      %46 = math.rsqrt %45 : vector<128x1xf32>
      %47 = vector.broadcast %46 : vector<128x1xf32> to vector<128x128xf32>
      %48 = arith.mulf %40, %47 : vector<128x128xf32>
      %49 = arith.truncf %48 : vector<128x128xf32> to vector<128x128xbf16>
      %c0_31 = arith.constant 0 : index
      %c0_32 = arith.constant 0 : index
      %50 = vector.load %arg11[%c0_31, %c0_32] : memref<128x128xbf16, #tpu.memory_space<vmem>>, vector<128x128xbf16>
      tpu.vector_store %arg11[%c0_31, %c0_32], %49 {strides = array<i32>} : memref<128x128xbf16, #tpu.memory_space<vmem>>, vector<128x128xbf16>,
    } else {
    }
    %c0 = arith.constant 0 : index
    %c0_1 = arith.constant 0 : index
    %3 = vector.load %arg9[%c0, %c0_1] : memref<128x256xbf16, #tpu.memory_space<vmem>>, vector<128x256xbf16>
    %c0_2 = arith.constant 0 : index
    %c0_3 = arith.constant 0 : index
    %4 = vector.load %arg11[%c0_2, %c0_3] : memref<128x128xbf16, #tpu.memory_space<vmem>>, vector<128x128xbf16>
    %cst = arith.constant dense<0.000000e+00> : vector<128x256xf32>
    %5 = tpu.matmul %4, %3, %cst {dimension_numbers = #tpu.dot_dimension_numbers<[1], [0], [0], [1], [0, 0, 1, 1], [], []>} : vector<128x128xbf16>, vector<128x256xbf16>, vector<128x256xf32> -> vector<128x256xf32>
    %c0_4 = arith.constant 0 : index
    %c0_5 = arith.constant 0 : index
    %6 = vector.load %arg10[%c0_4, %c0_5] : memref<128x256xf32, #tpu.memory_space<vmem>>, vector<128x256xf32>
    tpu.vector_store %arg10[%c0_4, %c0_5], %5 {strides = array<i32>} : memref<128x256xf32, #tpu.memory_space<vmem>>, vector<128x256xf32>,
    return
  }
  func.func @transform_0(%arg0: i32, %arg1: i32) -> (i32, i32) {
    %c0_i32 = arith.constant 0 : i32
    %c0_i32_0 = arith.constant 0 : i32
    return %arg0, %c0_i32 : i32, i32
  }
  func.func @transform_1(%arg0: i32, %arg1: i32) -> (i32, i32) {
    %c0_i32 = arith.constant 0 : i32
    %c0_i32_0 = arith.constant 0 : i32
    %c0_i32_1 = arith.constant 0 : i32
    return %c0_i32, %c0_i32_0 : i32, i32
  }
  func.func @transform_2(%arg0: i32, %arg1: i32) -> (i32, i32) {
    %c0_i32 = arith.constant 0 : i32
    %c0_i32_0 = arith.constant 0 : i32
    %c0_i32_1 = arith.constant 0 : i32
    return %c0_i32, %c0_i32_0 : i32, i32
  }
  func.func @transform_3(%arg0: i32, %arg1: i32) -> (i32, i32) {
    %c0_i32 = arith.constant 0 : i32
    %c0_i32_0 = arith.constant 0 : i32
    %c0_i32_1 = arith.constant 0 : i32
    return %c0_i32, %c0_i32_0 : i32, i32
  }
  func.func @transform_4(%arg0: i32, %arg1: i32) -> (i32, i32) {
    %c0_i32 = arith.constant 0 : i32
    %c0_i32_0 = arith.constant 0 : i32
    %c0_i32_1 = arith.constant 0 : i32
    return %c0_i32, %c0_i32_0 : i32, i32
  }
  func.func @transform_5(%arg0: i32, %arg1: i32) -> (i32, i32) {
    %c0_i32 = arith.constant 0 : i32
    %c0_i32_0 = arith.constant 0 : i32
    %c0_i32_1 = arith.constant 0 : i32
    return %c0_i32, %c0_i32_0 : i32, i32
  }
  func.func @transform_6(%arg0: i32, %arg1: i32) -> (i32, i32) {
    %c0_i32 = arith.constant 0 : i32
    %c0_i32_0 = arith.constant 0 : i32
    %c0_i32_1 = arith.constant 0 : i32
    return %c0_i32, %c0_i32_0 : i32, i32
  }
  func.func @transform_7(%arg0: i32, %arg1: i32) -> (i32, i32) {
    %c0_i32 = arith.constant 0 : i32
    %c0_i32_0 = arith.constant 0 : i32
    return %c0_i32, %arg1 : i32, i32
  }
  func.func @transform_8(%arg0: i32, %arg1: i32) -> (i32, i32) {
    %c0_i32 = arith.constant 0 : i32
    return %arg0, %arg1 : i32, i32
  }
}

</mosaic_0001>

<llo_original>
// kernel: tpu_custom_call.1
$region0: #{tpu_custom_call.1}
  #allocation0 [shape = 'u32[]', space=smem, size = 0x4, offset = 0x4, fixed_abs, tag = 'smem constant byte address 0x4 - core index']
  #allocation1 [shape = 'u32[144,128]{1,0:T(1,128)}', space=vmem, size = 0x12000, scoped, tag = 'internal scratch']
  #allocation2 [shape = 'bf16[128,128]{1,0:T(8,128)(2,1)}', space=vmem, size = 0x8000, scoped, tag = 'scratch operand']
  %s0 = inlined_call_operand.hbm [shape: bf16[256,128], index: 0, kind: input, shape index: {}]
  %s1 = inlined_call_operand.hbm [shape: bf16[128,256], index: 1, kind: input, shape index: {}]
  %s2 = inlined_call_operand.vmem [shape: f32[1,256], index: 2, kind: input, shape index: {}]
  %s3 = inlined_call_operand.hbm [shape: bf16[256,256], index: 3, kind: input, shape index: {}]
  %s4 = inlined_call_operand.vmem [shape: f32[1,256], index: 4, kind: input, shape index: {}]
  %s5 = inlined_call_operand.hbm [shape: bf16[256,128], index: 5, kind: input, shape index: {}]
  %s6 = inlined_call_operand.vmem [shape: f32[1,128], index: 6, kind: input, shape index: {}]
  %s7 = inlined_call_operand.hbm [shape: bf16[128,512], index: 7, kind: input, shape index: {}]
  %s8 = inlined_call_operand.hbm [shape: f32[256,512], index: 8, kind: output, shape index: {}]
  %s9 = sld [smem:[#allocation0]]
  $region89: #{tpu_custom_call.1} parent=0
    _
  %s11 = ssub.s32 1, %s9
  %s12 = scalar_select 0, %s11, %s9
  $region1: #{tpu_custom_call.1} parent=0
    #allocation3 [shape = 'u8[65536]{0}', space=vmem, size = 0x10000, scoped, tag = 'input window, operand 0']
    #allocation4 [shape = 's32[2]{0}', space=sflag, size = 0x8, scoped, tag = 'scoped memory for tpu_custom_call.1']
    #allocation5 [shape = 's32[2]{0}', space=sflag, size = 0x8, scoped, tag = 'scoped memory for tpu_custom_call.1']
    #allocation6 [shape = 'u8[65536]{0}', space=vmem, size = 0x10000, scoped, tag = 'input window, operand 1, single buffered']
    #allocation7 [shape = 's32[1]{0}', space=sflag, size = 0x4, scoped, tag = 'scoped memory for tpu_custom_call.1']
    #allocation8 [shape = 'u8[131072]{0}', space=vmem, size = 0x20000, scoped, tag = 'input window, operand 3, single buffered']
    #allocation9 [shape = 'u8[65536]{0}', space=vmem, size = 0x10000, scoped, tag = 'input window, operand 5, single buffered']
    #allocation10 [shape = 's32[1]{0}', space=sflag, size = 0x4, scoped, tag = 'scoped memory for tpu_custom_call.1']
    #allocation11 [shape = 'u8[131072]{0}', space=vmem, size = 0x20000, scoped, tag = 'input window, operand 7']
    #allocation12 [shape = 'u8[262144]{0}', space=vmem, size = 0x40000, scoped, tag = 'output window, operand 0']
    %13 = vsyncpa [#allocation4], 0
    %s14 = scalar_lea.sflag [#allocation4], 1
    %15 = vsyncpa %s14, 0
    %16 = vsyncpa [#allocation7], 0
    %17 = vsyncpa [#allocation10], 0
    %18 = vsyncpa [#allocation5], 0
    %s19 = scalar_lea.sflag [#allocation5], 1
    %20 = vsyncpa %s19, 0
    loop: start=0, step=1, limit=6
    $region2: #{tpu_custom_call.1} parent=1 // loop_pre_header
      _
    $region3: #{tpu_custom_call.1} parent=1 // loop_header
      %s22 = sphi 0, %s26
      %p23 = scmp.ge.s32.totalorder %s22, 6
      %s29 = sphi 0, %s41
      %s30 = sphi 0, %s37
      %s31 = sphi 0, %s29
      %s32 = sphi 0, %s30
      %s33 = sphi 0, %s31
      %s34 = sphi 0, %s32
      %s44 = sphi 0, %s46
      %s47 = sphi 0, %s44
      %s48 = sphi 0, %s47
      %s64 = sphi 0, %s48
      %s68 = sphi 0, %s68
      %s70 = sphi 0, %s68
      %s71 = sphi 0, %s70
      %s85 = sphi 0, %s71
      %s89 = sphi 0, %s89
      %s91 = sphi 0, %s89
      %s92 = sphi 0, %s91
      %s106 = sphi 0, %s92
      %s110 = sphi 0, %s110
      %s112 = sphi 0, %s110
      %s113 = sphi 0, %s112
      %s127 = sphi 0, %s113
      %s131 = sphi 0, %s131
      %s133 = sphi 0, %s131
      %s134 = sphi 0, %s133
      %s148 = sphi 0, %s134
      %s152 = sphi 0, %s152
      %s154 = sphi 0, %s152
      %s155 = sphi 0, %s154
      %s169 = sphi 0, %s155
      %s173 = sphi 0, %s173
      %s175 = sphi 0, %s173
      %s176 = sphi 0, %s175
      %s190 = sphi 0, %s176
      %s196 = sphi 0, %s198
      %s199 = sphi 0, %s196
      %s200 = sphi 0, %s199
      %s216 = sphi 0, %s200
      %s224 = sphi 0, %s226
      %s227 = sphi 0, %s224
      %s228 = sphi 0, %s227
      %s244 = sphi 0, %s228
    $region4: #{tpu_custom_call.1} parent=1 // loop_header_branch
      %25 = sbr.rel (%p23) target = $region8
    $region5: #{tpu_custom_call.1} parent=1 // loop_body
      %s27 = ssub.s32 %s22, 1
      %s28 = ssub.s32 %s22, 2
      %s35 = sadd.s32 1, %s30
      %p36 = scmp.ge.s32.totalorder %s35, 2
      %s37 = scalar_select %p36, 0, %s35
      %s38 = sadd.s32 1, %s29
      %s39 = scalar_select %p36, %s38, %s29
      %p40 = scmp.ge.s32.totalorder %s39, 2
      %s41 = scalar_select %p40, 0, %s39
      %s42 = ssub.s32 %s29, %s41
      %p43 = scmp.eq.s32.totalorder %s42, 0
      %s45 = sadd.s32 %s44, 1
      %s46 = scalar_select %p43, %s44, %s45
      %p49 = pneg %p43
      %p50 = scmp.eq.s32.totalorder %s22, 3
      %p51 = por %p49, %p50
      %p52 = scmp.ne.s32.totalorder %s44, %s47
      %p53 = scmp.eq.s32.totalorder %s22, 0
      %p54 = por %p52, %p53
      %p55 = scmp.ne.s32.totalorder %s44, %s47
      %p56 = scmp.eq.s32.totalorder %s27, 3
      %p57 = por %p55, %p56
      %p58 = scmp.ne.s32.totalorder %s47, %s48
      %p59 = scmp.eq.s32.totalorder %s27, 0
      %p60 = por %p58, %p59
      %p61 = scmp.ne.s32.totalorder %s47, %s48
      %p62 = scmp.eq.s32.totalorder %s28, 3
      %p63 = por %p61, %p62
      %p65 = scmp.ne.s32.totalorder %s48, %s64
      %p66 = scmp.eq.s32.totalorder %s28, 0
      %p67 = por %p65, %p66
      %s69 = sadd.s32 %s68, 1
      %p72 = scmp.eq.s32.totalorder %s22, 3
      %p73 = scmp.ne.s32.totalorder %s68, %s70
      %p74 = scmp.eq.s32.totalorder %s22, 0
      %p75 = por %p73, %p74
      %p76 = scmp.ne.s32.totalorder %s68, %s70
      %p77 = scmp.eq.s32.totalorder %s27, 3
      %p78 = por %p76, %p77
      %p79 = scmp.ne.s32.totalorder %s70, %s71
      %p80 = scmp.eq.s32.totalorder %s27, 0
      %p81 = por %p79, %p80
      %p82 = scmp.ne.s32.totalorder %s70, %s71
      %p83 = scmp.eq.s32.totalorder %s28, 3
      %p84 = por %p82, %p83
      %p86 = scmp.ne.s32.totalorder %s71, %s85
      %p87 = scmp.eq.s32.totalorder %s28, 0
      %p88 = por %p86, %p87
      %s90 = sadd.s32 %s89, 1
      %p93 = scmp.eq.s32.totalorder %s22, 3
      %p94 = scmp.ne.s32.totalorder %s89, %s91
      %p95 = scmp.eq.s32.totalorder %s22, 0
      %p96 = por %p94, %p95
      %p97 = scmp.ne.s32.totalorder %s89, %s91
      %p98 = scmp.eq.s32.totalorder %s27, 3
      %p99 = por %p97, %p98
      %p100 = scmp.ne.s32.totalorder %s91, %s92
      %p101 = scmp.eq.s32.totalorder %s27, 0
      %p102 = por %p100, %p101
      %p103 = scmp.ne.s32.totalorder %s91, %s92
      %p104 = scmp.eq.s32.totalorder %s28, 3
      %p105 = por %p103, %p104
      %p107 = scmp.ne.s32.totalorder %s92, %s106
      %p108 = scmp.eq.s32.totalorder %s28, 0
      %p109 = por %p107, %p108
      %s111 = sadd.s32 %s110, 1
      %p114 = scmp.eq.s32.totalorder %s22, 3
      %p115 = scmp.ne.s32.totalorder %s110, %s112
      %p116 = scmp.eq.s32.totalorder %s22, 0
      %p117 = por %p115, %p116
      %p118 = scmp.ne.s32.totalorder %s110, %s112
      %p119 = scmp.eq.s32.totalorder %s27, 3
      %p120 = por %p118, %p119
      %p121 = scmp.ne.s32.totalorder %s112, %s113
      %p122 = scmp.eq.s32.totalorder %s27, 0
      %p123 = por %p121, %p122
      %p124 = scmp.ne.s32.totalorder %s112, %s113
      %p125 = scmp.eq.s32.totalorder %s28, 3
      %p126 = por %p124, %p125
      %p128 = scmp.ne.s32.totalorder %s113, %s127
      %p129 = scmp.eq.s32.totalorder %s28, 0
      %p130 = por %p128, %p129
      %s132 = sadd.s32 %s131, 1
      %p135 = scmp.eq.s32.totalorder %s22, 3
      %p136 = scmp.ne.s32.totalorder %s131, %s133
      %p137 = scmp.eq.s32.totalorder %s22, 0
      %p138 = por %p136, %p137
      %p139 = scmp.ne.s32.totalorder %s131, %s133
      %p140 = scmp.eq.s32.totalorder %s27, 3
      %p141 = por %p139, %p140
      %p142 = scmp.ne.s32.totalorder %s133, %s134
      %p143 = scmp.eq.s32.totalorder %s27, 0
      %p144 = por %p142, %p143
      %p145 = scmp.ne.s32.totalorder %s133, %s134
      %p146 = scmp.eq.s32.totalorder %s28, 3
      %p147 = por %p145, %p146
      %p149 = scmp.ne.s32.totalorder %s134, %s148
      %p150 = scmp.eq.s32.totalorder %s28, 0
      %p151 = por %p149, %p150
      %s153 = sadd.s32 %s152, 1
      %p156 = scmp.eq.s32.totalorder %s22, 3
      %p157 = scmp.ne.s32.totalorder %s152, %s154
      %p158 = scmp.eq.s32.totalorder %s22, 0
      %p159 = por %p157, %p158
      %p160 = scmp.ne.s32.totalorder %s152, %s154
      %p161 = scmp.eq.s32.totalorder %s27, 3
      %p162 = por %p160, %p161
      %p163 = scmp.ne.s32.totalorder %s154, %s155
      %p164 = scmp.eq.s32.totalorder %s27, 0
      %p165 = por %p163, %p164
      %p166 = scmp.ne.s32.totalorder %s154, %s155
      %p167 = scmp.eq.s32.totalorder %s28, 3
      %p168 = por %p166, %p167
      %p170 = scmp.ne.s32.totalorder %s155, %s169
      %p171 = scmp.eq.s32.totalorder %s28, 0
      %p172 = por %p170, %p171
      %s174 = sadd.s32 %s173, 1
      %p177 = scmp.eq.s32.totalorder %s22, 3
      %p178 = scmp.ne.s32.totalorder %s173, %s175
      %p179 = scmp.eq.s32.totalorder %s22, 0
      %p180 = por %p178, %p179
      %p181 = scmp.ne.s32.totalorder %s173, %s175
      %p182 = scmp.eq.s32.totalorder %s27, 3
      %p183 = por %p181, %p182
      %p184 = scmp.ne.s32.totalorder %s175, %s176
      %p185 = scmp.eq.s32.totalorder %s27, 0
      %p186 = por %p184, %p185
      %p187 = scmp.ne.s32.totalorder %s175, %s176
      %p188 = scmp.eq.s32.totalorder %s28, 3
      %p189 = por %p187, %p188
      %p191 = scmp.ne.s32.totalorder %s176, %s190
      %p192 = scmp.eq.s32.totalorder %s28, 0
      %p193 = por %p191, %p192
      %s194 = ssub.s32 %s30, %s37
      %p195 = scmp.eq.s32.totalorder %s194, 0
      %s197 = sadd.s32 %s196, 1
      %s198 = scalar_select %p195, %s196, %s197
      %p201 = pneg %p195
      %p202 = scmp.eq.s32.totalorder %s22, 3
      %p203 = por %p201, %p202
      %p204 = scmp.ne.s32.totalorder %s196, %s199
      %p205 = scmp.eq.s32.totalorder %s22, 0
      %p206 = por %p204, %p205
      %p207 = scmp.ne.s32.totalorder %s196, %s199
      %p208 = scmp.eq.s32.totalorder %s27, 3
      %p209 = por %p207, %p208
      %p210 = scmp.ne.s32.totalorder %s199, %s200
      %p211 = scmp.eq.s32.totalorder %s27, 0
      %p212 = por %p210, %p211
      %p213 = scmp.ne.s32.totalorder %s199, %s200
      %p214 = scmp.eq.s32.totalorder %s28, 3
      %p215 = por %p213, %p214
      %p217 = scmp.ne.s32.totalorder %s200, %s216
      %p218 = scmp.eq.s32.totalorder %s28, 0
      %p219 = por %p217, %p218
      %s220 = ssub.s32 %s29, %s41
      %s221 = ssub.s32 %s30, %s37
      %s222 = sor.u32 %s220, %s221
      %p223 = scmp.eq.s32.totalorder %s222, 0
      %s225 = sadd.s32 %s224, 1
      %s226 = scalar_select %p223, %s224, %s225
      %p229 = pneg %p223
      %p230 = scmp.eq.s32.totalorder %s22, 3
      %p231 = por %p229, %p230
      %p232 = scmp.ne.s32.totalorder %s224, %s227
      %p233 = scmp.eq.s32.totalorder %s22, 0
      %p234 = por %p232, %p233
      %p235 = scmp.ne.s32.totalorder %s224, %s227
      %p236 = scmp.eq.s32.totalorder %s27, 3
      %p237 = por %p235, %p236
      %p238 = scmp.ne.s32.totalorder %s227, %s228
      %p239 = scmp.eq.s32.totalorder %s27, 0
      %p240 = por %p238, %p239
      %p241 = scmp.ne.s32.totalorder %s227, %s228
      %p242 = scmp.eq.s32.totalorder %s28, 3
      %p243 = por %p241, %p242
      %p245 = scmp.ne.s32.totalorder %s228, %s244
      %p246 = scmp.eq.s32.totalorder %s28, 0
      %p247 = por %p245, %p246
      %p248 = scmp.le.s32.totalorder 1, %s22
      %p249 = scmp.lt.s32.totalorder %s22, 5
      %p250 = pnand %p248, %p249
      %p251 = pneg %p250
      // Predicated region
      $region9: #{tpu_custom_call.1} parent=5 // pred_check
        _
      $region10: #{tpu_custom_call.1} parent=5 // pred_check_branch
        %253 = sbr.rel (%p250) target = $region12
      $region11: #{tpu_custom_call.1} parent=5 // pred_region
        %s254 = ssub.s32 %s22, 1
        // Predicated region
        $region13: #{tpu_custom_call.1} parent=11 // pred_check
          %p255 = pneg %p81
        $region14: #{tpu_custom_call.1} parent=11 // pred_check_branch
          %257 = sbr.rel (%p255) target = $region16
        $region15: #{tpu_custom_call.1} parent=11 // pred_region
          %s259 = ssub.s32 2048, 2048
          %260 = vsyncadd [#allocation7], %s259
          %s261 = sshll.u32 [#allocation6], 4
          %s262 = int_to_ptr.vmem [resolvable:$true] %s261
          %267 = dma.hbm_to_vmem [thread:$0]  %s1, 2048, %s262, [#allocation7], 128, 128, 8
        $region16: #{tpu_custom_call.1} parent=11 // pred_fallthru
          _
        // Predicated region
        $region17: #{tpu_custom_call.1} parent=11 // pred_check
          %p268 = pneg %p102
        $region18: #{tpu_custom_call.1} parent=11 // pred_check_branch
          %270 = sbr.rel (%p268) target = $region20
        $region19: #{tpu_custom_call.1} parent=11 // pred_region
          _
        $region20: #{tpu_custom_call.1} parent=11 // pred_fallthru
          _
        // Predicated region
        $region21: #{tpu_custom_call.1} parent=11 // pred_check
          %p271 = pneg %p123
        $region22: #{tpu_custom_call.1} parent=11 // pred_check_branch
          %273 = sbr.rel (%p271) target = $region24
        $region23: #{tpu_custom_call.1} parent=11 // pred_region
          %s275 = ssub.s32 4096, 4096
          %276 = vsyncadd [#allocation7], %s275
          %s277 = sshll.u32 [#allocation8], 4
          %s278 = int_to_ptr.vmem [resolvable:$true] %s277
          %283 = dma.hbm_to_vmem [thread:$0]  %s3, 4096, %s278, [#allocation7], 128, 128, 8
        $region24: #{tpu_custom_call.1} parent=11 // pred_fallthru
          _
        // Predicated region
        $region25: #{tpu_custom_call.1} parent=11 // pred_check
          %p284 = pneg %p144
        $region26: #{tpu_custom_call.1} parent=11 // pred_check_branch
          %286 = sbr.rel (%p284) target = $region28
        $region27: #{tpu_custom_call.1} parent=11 // pred_region
          _
        $region28: #{tpu_custom_call.1} parent=11 // pred_fallthru
          _
        // Predicated region
        $region29: #{tpu_custom_call.1} parent=11 // pred_check
          %p287 = pneg %p165
        $region30: #{tpu_custom_call.1} parent=11 // pred_check_branch
          %289 = sbr.rel (%p287) target = $region32
        $region31: #{tpu_custom_call.1} parent=11 // pred_region
          %s291 = ssub.s32 2048, 2048
          %292 = vsyncadd [#allocation10], %s291
          %s293 = sshll.u32 [#allocation9], 4
          %s294 = int_to_ptr.vmem [resolvable:$true] %s293
          %299 = dma.hbm_to_vmem [thread:$0]  %s5, 2048, %s294, [#allocation10], 64, 64, 4
        $region32: #{tpu_custom_call.1} parent=11 // pred_fallthru
          _
        // Predicated region
        $region33: #{tpu_custom_call.1} parent=11 // pred_check
          %p300 = pneg %p186
        $region34: #{tpu_custom_call.1} parent=11 // pred_check_branch
          %302 = sbr.rel (%p300) target = $region36
        $region35: #{tpu_custom_call.1} parent=11 // pred_region
          _
        $region36: #{tpu_custom_call.1} parent=11 // pred_fallthru
          _
      $region12: #{tpu_custom_call.1} parent=5 // pred_fallthru
        _
      %p303 = scmp.lt.s32.totalorder %s22, 4
      // Predicated region
      $region37: #{tpu_custom_call.1} parent=5 // pred_check
        %p304 = pneg %p303
      $region38: #{tpu_custom_call.1} parent=5 // pred_check_branch
        %306 = sbr.rel (%p304) target = $region40
      $region39: #{tpu_custom_call.1} parent=5 // pred_region
        // Predicated region
        $region41: #{tpu_custom_call.1} parent=39 // pred_check
          %p307 = pneg %p54
        $region42: #{tpu_custom_call.1} parent=39 // pred_check_branch
          %309 = sbr.rel (%p307) target = $region44
        $region43: #{tpu_custom_call.1} parent=39 // pred_region
          %s310 = sand.u32 %s22, 1
          %s311 = scalar_lea.sflag [#allocation4], %s310
          %s312 = sand.u32 %s44, 1
          %s313 = smul.addr %s312, 64
          %s314 = scalar_lea.vmem [#allocation3], %s313
          %s315 = smul.u32 16, %s29
          %s317 = ssub.s32 1024, 1024
          %318 = vsyncadd %s311, %s317
          %s319 = smul.addr %s315, 64
          %s320 = scalar_lea.hbm %s0, %s319
          %s321 = sshll.u32 %s314, 4
          %s322 = int_to_ptr.vmem [resolvable:$true] %s321
          %327 = dma.hbm_to_vmem [thread:$0]  %s320, 1024, %s322, %s311, 64, 64, 4
        $region44: #{tpu_custom_call.1} parent=39 // pred_fallthru
          _
        // Predicated region
        $region45: #{tpu_custom_call.1} parent=39 // pred_check
          %p328 = pneg %p206
        $region46: #{tpu_custom_call.1} parent=39 // pred_check_branch
          %330 = sbr.rel (%p328) target = $region48
        $region47: #{tpu_custom_call.1} parent=39 // pred_region
          %s331 = sand.u32 %s22, 1
          %s332 = scalar_lea.sflag [#allocation4], %s331
          %s333 = sand.u32 %s196, 1
          %s334 = smul.addr %s333, 128
          %s335 = scalar_lea.vmem [#allocation11], %s334
          %s336 = smul.u32 2, %s30
          %s338 = ssub.s32 2048, 2048
          %339 = vsyncadd %s332, %s338
          %s340 = smul.addr %s336, 64
          %s341 = scalar_lea.hbm %s7, %s340
          %s342 = sshll.u32 %s335, 4
          %s343 = int_to_ptr.vmem [resolvable:$true] %s342
          %348 = dma.hbm_to_vmem [thread:$0]  %s341, 2048, %s343, %s332, 256, 128, 8
        $region48: #{tpu_custom_call.1} parent=39 // pred_fallthru
          _
      $region40: #{tpu_custom_call.1} parent=5 // pred_fallthru
        _
      %p349 = scmp.le.s32.totalorder 1, %s22
      %p350 = scmp.lt.s32.totalorder %s22, 5
      %p351 = pnand %p349, %p350
      %p352 = pneg %p351
      // Predicated region
      $region49: #{tpu_custom_call.1} parent=5 // pred_check
        _
      $region50: #{tpu_custom_call.1} parent=5 // pred_check_branch
        %354 = sbr.rel (%p351) target = $region52
      $region51: #{tpu_custom_call.1} parent=5 // pred_region
        %s355 = ssub.s32 %s22, 1
        %s356 = sand.u32 %s27, 1
        %s357 = scalar_lea.sflag [#allocation4], %s356
        %s358 = sand.u32 %s47, 1
        %s359 = smul.addr %s358, 64
        %s360 = scalar_lea.vmem [#allocation3], %s359
        // Predicated region
        $region53: #{tpu_custom_call.1} parent=51 // pred_check
          %p361 = pneg %p60
        $region54: #{tpu_custom_call.1} parent=51 // pred_check_branch
          %363 = sbr.rel (%p361) target = $region56
        $region55: #{tpu_custom_call.1} parent=51 // pred_region
          %364 = dma.done %s357, 1024
        $region56: #{tpu_custom_call.1} parent=51 // pred_fallthru
          _
        // Predicated region
        $region57: #{tpu_custom_call.1} parent=51 // pred_check
          %p365 = pneg %p81
        $region58: #{tpu_custom_call.1} parent=51 // pred_check_branch
          %367 = sbr.rel (%p365) target = $region60
        $region59: #{tpu_custom_call.1} parent=51 // pred_region
          %368 = dma.done [#allocation7], 2048
        $region60: #{tpu_custom_call.1} parent=51 // pred_fallthru
          _
        // Predicated region
        $region61: #{tpu_custom_call.1} parent=51 // pred_check
          %p369 = pneg %p123
        $region62: #{tpu_custom_call.1} parent=51 // pred_check_branch
          %371 = sbr.rel (%p369) target = $region64
        $region63: #{tpu_custom_call.1} parent=51 // pred_region
          %372 = dma.done [#allocation7], 4096
        $region64: #{tpu_custom_call.1} parent=51 // pred_fallthru
          _
        // Predicated region
        $region65: #{tpu_custom_call.1} parent=51 // pred_check
          %p373 = pneg %p165
        $region66: #{tpu_custom_call.1} parent=51 // pred_check_branch
          %375 = sbr.rel (%p373) target = $region68
        $region67: #{tpu_custom_call.1} parent=51 // pred_region
          %376 = dma.done [#allocation10], 2048
        $region68: #{tpu_custom_call.1} parent=51 // pred_fallthru
          _
        %s377 = sand.u32 %s27, 1
        %s378 = scalar_lea.sflag [#allocation4], %s377
        %s379 = sand.u32 %s199, 1
        %s380 = smul.addr %s379, 128
        %s381 = scalar_lea.vmem [#allocation11], %s380
        // Predicated region
        $region69: #{tpu_custom_call.1} parent=51 // pred_check
          %p382 = pneg %p212
        $region70: #{tpu_custom_call.1} parent=51 // pred_check_branch
          %384 = sbr.rel (%p382) target = $region72
        $region71: #{tpu_custom_call.1} parent=51 // pred_region
          %385 = dma.done %s378, 2048
        $region72: #{tpu_custom_call.1} parent=51 // pred_fallthru
          _
        %s386 = sand.u32 %s27, 1
        %s387 = scalar_lea.sflag [#allocation4], %s386
        %s388 = sand.u32 %s47, 1
        %s389 = smul.addr %s388, 64
        %s390 = scalar_lea.vmem [#allocation3], %s389
        %p391 = pneg %p60
        %p392 = pneg %p57
        %p393 = pneg %p81
        %p394 = pneg %p78
        %p395 = pneg %p102
        %p396 = pneg %p99
        %p397 = pneg %p123
        %p398 = pneg %p120
        %p399 = pneg %p144
        %p400 = pneg %p141
        %p401 = pneg %p165
        %p402 = pneg %p162
        %p403 = pneg %p186
        %p404 = pneg %p183
        %s405 = sand.u32 %s27, 1
        %s406 = scalar_lea.sflag [#allocation4], %s405
        %s407 = sand.u32 %s199, 1
        %s408 = smul.addr %s407, 128
        %s409 = scalar_lea.vmem [#allocation11], %s408
        %p410 = pneg %p212
        %p411 = pneg %p209
        %p412 = pneg %p240
        %p413 = pneg %p237
        %s414 = sand.u32 %s227, 1
        %s415 = scalar_lea.sflag [#allocation5], %s414
        %s416 = sand.u32 %s227, 1
        %s417 = smul.addr %s416, 256
        %s418 = scalar_lea.vmem [#allocation12], %s417
        %s419 = smul.u32 16, %s31
        %s420 = smul.u32 2, %s32
        %s421 = smul.u32 16, %s31
        %s422 = smul.u32 2, %s32
        %p424 = scmp.eq.s32.totalorder %s32, 0
        // Predicated region
        $region73: #{tpu_custom_call.1} parent=51 // pred_check
          %p425 = pneg %p424
        $region74: #{tpu_custom_call.1} parent=51 // pred_check_branch
          %427 = sbr.rel (%p425) target = $region76
        $region75: #{tpu_custom_call.1} parent=51 // pred_region
          %v428 = vld [vmem:[%s360] sm:$0xf]
          %v429 = vld [vmem:[%s360 + $0x4] sm:$0xf]
          %v430 = vld [vmem:[%s360 + $0x8] sm:$0xf]
          %v431 = vld [vmem:[%s360 + $0xc] sm:$0xf]
          %v432 = vld [vmem:[%s360 + $0x10] sm:$0xf]
          %v433 = vld [vmem:[%s360 + $0x14] sm:$0xf]
          %v434 = vld [vmem:[%s360 + $0x18] sm:$0xf]
          %v435 = vld [vmem:[%s360 + $0x1c] sm:$0xf]
          %v436 = vld [vmem:[%s360 + $0x20] sm:$0xf]
          %v437 = vld [vmem:[%s360 + $0x24] sm:$0xf]
          %v438 = vld [vmem:[%s360 + $0x28] sm:$0xf]
          %v439 = vld [vmem:[%s360 + $0x2c] sm:$0xf]
          %v440 = vld [vmem:[%s360 + $0x30] sm:$0xf]
          %v441 = vld [vmem:[%s360 + $0x34] sm:$0xf]
          %v442 = vld [vmem:[%s360 + $0x38] sm:$0xf]
          %v443 = vld [vmem:[%s360 + $0x3c] sm:$0xf]
          %v444 = vld [vmem:[#allocation6] sm:$0xff]
          %v445 = vld [vmem:[#allocation6 + $0x8] sm:$0xff]
          %v446 = vld [vmem:[#allocation6 + $0x10] sm:$0xff]
          %v447 = vld [vmem:[#allocation6 + $0x18] sm:$0xff]
          %v448 = vld [vmem:[#allocation6 + $0x20] sm:$0xff]
          %v449 = vld [vmem:[#allocation6 + $0x28] sm:$0xff]
          %v450 = vld [vmem:[#allocation6 + $0x30] sm:$0xff]
          %v451 = vld [vmem:[#allocation6 + $0x38] sm:$0xff]
          %v452 = vld [vmem:[#allocation6 + $0x40] sm:$0xff]
          %v453 = vld [vmem:[#allocation6 + $0x48] sm:$0xff]
          %v454 = vld [vmem:[#allocation6 + $0x50] sm:$0xff]
          %v455 = vld [vmem:[#allocation6 + $0x58] sm:$0xff]
          %v456 = vld [vmem:[#allocation6 + $0x60] sm:$0xff]
          %v457 = vld [vmem:[#allocation6 + $0x68] sm:$0xff]
          %v458 = vld [vmem:[#allocation6 + $0x70] sm:$0xff]
          %v459 = vld [vmem:[#allocation6 + $0x78] sm:$0xff]
          %v460 = vld [vmem:[%s2] sm:$0x3]
          %v462 = vlaneseq
          %v463 = vshrl.u32 %v462, 7
          %v464 = vsub.s32 0, %v463
          %v465 = vrot.slane %v460, %v464
          %v466 = vlaneseq
          %v467 = vshrl.u32 %v466, 7
          %v468 = vsub.s32 1, %v467
          %v469 = vrot.slane %v460, %v468
          %v488 = vunpack.c.l.b16 %v428
          %v489 = vunpack.c.l.b16 %v429
          %v490 = vunpack.c.l.b16 %v430
          %v491 = vunpack.c.l.b16 %v431
          %v492 = vunpack.c.l.b16 %v432
          %v493 = vunpack.c.l.b16 %v433
          %v494 = vunpack.c.l.b16 %v434
          %v495 = vunpack.c.l.b16 %v435
          %v496 = vunpack.c.l.b16 %v436
          %v497 = vunpack.c.l.b16 %v437
          %v498 = vunpack.c.l.b16 %v438
          %v499 = vunpack.c.l.b16 %v439
          %v500 = vunpack.c.l.b16 %v440
          %v501 = vunpack.c.l.b16 %v441
          %v502 = vunpack.c.l.b16 %v442
          %v503 = vunpack.c.l.b16 %v443
          %v504 = vpack.c.b16 %v489, %v488
          %v505 = vpack.c.b16 %v491, %v490
          %v506 = vpack.c.b16 %v493, %v492
          %v507 = vpack.c.b16 %v495, %v494
          %v508 = vpack.c.b16 %v497, %v496
          %v509 = vpack.c.b16 %v499, %v498
          %v510 = vpack.c.b16 %v501, %v500
          %v511 = vpack.c.b16 %v503, %v502
          %v536 = vunpack.c.l.b16 %v444
          %v537 = vunpack.c.h.b16 %v444
          %v538 = vunpack.c.l.b16 %v445
          %v539 = vunpack.c.h.b16 %v445
          %v540 = vunpack.c.l.b16 %v446
          %v541 = vunpack.c.h.b16 %v446
          %v542 = vunpack.c.l.b16 %v447
          %v543 = vunpack.c.h.b16 %v447
          %v544 = vunpack.c.l.b16 %v448
          %v545 = vunpack.c.h.b16 %v448
          %v546 = vunpack.c.l.b16 %v449
          %v547 = vunpack.c.h.b16 %v449
          %v548 = vunpack.c.l.b16 %v450
          %v549 = vunpack.c.h.b16 %v450
          %v550 = vunpack.c.l.b16 %v451
          %v551 = vunpack.c.h.b16 %v451
          %v552 = vunpack.c.l.b16 %v452
          %v553 = vunpack.c.h.b16 %v452
          %v554 = vunpack.c.l.b16 %v453
          %v555 = vunpack.c.h.b16 %v453
          %v556 = vunpack.c.l.b16 %v454
          %v557 = vunpack.c.h.b16 %v454
          %v558 = vunpack.c.l.b16 %v455
          %v559 = vunpack.c.h.b16 %v455
          %v560 = vunpack.c.l.b16 %v456
          %v561 = vunpack.c.h.b16 %v456
          %v562 = vunpack.c.l.b16 %v457
          %v563 = vunpack.c.h.b16 %v457
          %v564 = vunpack.c.l.b16 %v458
          %v565 = vunpack.c.h.b16 %v458
          %v566 = vunpack.c.l.b16 %v459
          %v567 = vunpack.c.h.b16 %v459
          %v568 = vpack.c.b16 %v538, %v536
          %v569 = vpack.c.b16 %v539, %v537
          %v570 = vpack.c.b16 %v542, %v540
          %v571 = vpack.c.b16 %v543, %v541
          %v572 = vpack.c.b16 %v546, %v544
          %v573 = vpack.c.b16 %v547, %v545
          %v574 = vpack.c.b16 %v550, %v548
          %v575 = vpack.c.b16 %v551, %v549
          %v576 = vpack.c.b16 %v554, %v552
          %v577 = vpack.c.b16 %v555, %v553
          %v578 = vpack.c.b16 %v558, %v556
          %v579 = vpack.c.b16 %v559, %v557
          %v580 = vpack.c.b16 %v562, %v560
          %v581 = vpack.c.b16 %v563, %v561
          %v582 = vpack.c.b16 %v566, %v564
          %v583 = vpack.c.b16 %v567, %v565
          %600 = vmatprep.subr.bf16.mxu0 %v583
          %601 = vmatpush1.bf16.msra.mxu0 %v582
          %602 = vmatprep.subr.bf16.mxu0 %v581
          %603 = vmatpush1.bf16.msra.mxu0 %v580
          %604 = vmatprep.subr.bf16.mxu0 %v579
          %605 = vmatpush1.bf16.msra.mxu0 %v578
          %606 = vmatprep.subr.bf16.mxu0 %v577
          %607 = vmatpush1.bf16.msra.mxu0 %v576
          %608 = vmatprep.subr.bf16.mxu0 %v575
          %609 = vmatpush1.bf16.msra.mxu0 %v574
          %610 = vmatprep.subr.bf16.mxu0 %v573
          %611 = vmatpush1.bf16.msra.mxu0 %v572
          %612 = vmatprep.subr.bf16.mxu0 %v571
          %613 = vmatpush1.bf16.msra.mxu0 %v570
          %614 = vmatprep.subr.bf16.mxu0 %v569
          %615 = vmatpush1.bf16.msra.mxu0 %v568
          %616 = vmatprep.subr.bf16.mxu0 0
          %617 = vmatpush2.bf16.msra.mxu0 0
          %618 = vmatprep.subr.bf16.mxu0 0
          %619 = vmatpush2.bf16.msra.mxu0 0
          %620 = vmatprep.subr.bf16.mxu0 0
          %621 = vmatpush2.bf16.msra.mxu0 0
          %622 = vmatprep.subr.bf16.mxu0 0
          %623 = vmatpush2.bf16.msra.mxu0 0
          %624 = vmatprep.subr.bf16.mxu0 0
          %625 = vmatpush2.bf16.msra.mxu0 0
          %626 = vmatprep.subr.bf16.mxu0 0
          %627 = vmatpush2.bf16.msra.mxu0 0
          %628 = vmatprep.subr.bf16.mxu0 0
          %629 = vmatpush2.bf16.msra.mxu0 0
          %630 = vmatprep.subr.bf16.mxu0 0
          %631 = vmatpush2.bf16.msra.mxu0 0
          %632 = vmatprep.mubr.bf16.mxu0 0
          %633 = vmatmul.mubr.bf16.gmra.mxu0 %v504
          %v634 = vpop.f32.mrf.mxu0
          %v635 = vadd.f32 %v465, %v634
          %v636 = vpop.f32.mrf.mxu0
          %v637 = vadd.f32 %v469, %v636
          %v638 = vpop.f32.mrf.mxu0
          %v639 = vadd.f32 %v465, %v638
          %v640 = vpop.f32.mrf.mxu0
          %v641 = vadd.f32 %v469, %v640
          %642 = vmatprep.mubr.bf16.mxu0 0
          %643 = vmatmul.mubr.bf16.gmra.mxu0 %v505
          %v644 = vpop.f32.mrf.mxu0
          %v645 = vadd.f32 %v465, %v644
          %v646 = vpop.f32.mrf.mxu0
          %v647 = vadd.f32 %v469, %v646
          %v648 = vpop.f32.mrf.mxu0
          %v649 = vadd.f32 %v465, %v648
          %v650 = vpop.f32.mrf.mxu0
          %v651 = vadd.f32 %v469, %v650
          %652 = vmatprep.mubr.bf16.mxu0 0
          %653 = vmatmul.mubr.bf16.gmra.mxu0 %v506
          %v654 = vpop.f32.mrf.mxu0
          %v655 = vadd.f32 %v465, %v654
          %v656 = vpop.f32.mrf.mxu0
          %v657 = vadd.f32 %v469, %v656
          %v658 = vpop.f32.mrf.mxu0
          %v659 = vadd.f32 %v465, %v658
          %v660 = vpop.f32.mrf.mxu0
          %v661 = vadd.f32 %v469, %v660
          %662 = vmatprep.mubr.bf16.mxu0 0
          %663 = vmatmul.mubr.bf16.gmra.mxu0 %v507
          %v664 = vpop.f32.mrf.mxu0
          %v665 = vadd.f32 %v465, %v664
          %v666 = vpop.f32.mrf.mxu0
          %v667 = vadd.f32 %v469, %v666
          %v668 = vpop.f32.mrf.mxu0
          %v669 = vadd.f32 %v465, %v668
          %v670 = vpop.f32.mrf.mxu0
          %v671 = vadd.f32 %v469, %v670
          %672 = vmatprep.mubr.bf16.mxu0 0
          %673 = vmatmul.mubr.bf16.gmra.mxu0 %v508
          %v674 = vpop.f32.mrf.mxu0
          %v675 = vadd.f32 %v465, %v674
          %v676 = vpop.f32.mrf.mxu0
          %v677 = vadd.f32 %v469, %v676
          %v678 = vpop.f32.mrf.mxu0
          %v679 = vadd.f32 %v465, %v678
          %v680 = vpop.f32.mrf.mxu0
          %v681 = vadd.f32 %v469, %v680
          %682 = vmatprep.mubr.bf16.mxu0 0
          %683 = vmatmul.mubr.bf16.gmra.mxu0 %v509
          %v684 = vpop.f32.mrf.mxu0
          %v685 = vadd.f32 %v465, %v684
          %v686 = vpop.f32.mrf.mxu0
          %v687 = vadd.f32 %v469, %v686
          %v688 = vpop.f32.mrf.mxu0
          %v689 = vadd.f32 %v465, %v688
          %v690 = vpop.f32.mrf.mxu0
          %v691 = vadd.f32 %v469, %v690
          %692 = vmatprep.mubr.bf16.mxu0 0
          %693 = vmatmul.mubr.bf16.gmra.mxu0 %v510
          %v694 = vpop.f32.mrf.mxu0
          %v695 = vadd.f32 %v465, %v694
          %v696 = vpop.f32.mrf.mxu0
          %v697 = vadd.f32 %v469, %v696
          %v698 = vpop.f32.mrf.mxu0
          %v699 = vadd.f32 %v465, %v698
          %v700 = vpop.f32.mrf.mxu0
          %v701 = vadd.f32 %v469, %v700
          %702 = vmatprep.mubr.bf16.mxu0 0
          %703 = vmatmul.mubr.bf16.gmra.mxu0 %v511
          %v704 = vpop.f32.mrf.mxu0
          %v705 = vadd.f32 %v465, %v704
          %v706 = vpop.f32.mrf.mxu0
          %v707 = vadd.f32 %v469, %v706
          %v708 = vpop.f32.mrf.mxu0
          %v709 = vadd.f32 %v465, %v708
          %v710 = vpop.f32.mrf.mxu0
          %v711 = vadd.f32 %v469, %v710
          %712 = vdwg.mxu0
          %v713 = vmul.f32 %v635, 0.5
          %v714 = vmul.f32 %v637, 0.5
          %v715 = vmul.f32 %v639, 0.5
          %v716 = vmul.f32 %v641, 0.5
          %v717 = vmul.f32 %v645, 0.5
          %v718 = vmul.f32 %v647, 0.5
          %v719 = vmul.f32 %v649, 0.5
          %v720 = vmul.f32 %v651, 0.5
          %v721 = vmul.f32 %v655, 0.5
          %v722 = vmul.f32 %v657, 0.5
          %v723 = vmul.f32 %v659, 0.5
          %v724 = vmul.f32 %v661, 0.5
          %v725 = vmul.f32 %v665, 0.5
          %v726 = vmul.f32 %v667, 0.5
          %v727 = vmul.f32 %v669, 0.5
          %v728 = vmul.f32 %v671, 0.5
          %v729 = vmul.f32 %v675, 0.5
          %v730 = vmul.f32 %v677, 0.5
          %v731 = vmul.f32 %v679, 0.5
          %v732 = vmul.f32 %v681, 0.5
          %v733 = vmul.f32 %v685, 0.5
          %v734 = vmul.f32 %v687, 0.5
          %v735 = vmul.f32 %v689, 0.5
          %v736 = vmul.f32 %v691, 0.5
          %v737 = vmul.f32 %v695, 0.5
          %v738 = vmul.f32 %v697, 0.5
          %v739 = vmul.f32 %v699, 0.5
          %v740 = vmul.f32 %v701, 0.5
          %v741 = vmul.f32 %v705, 0.5
          %v742 = vmul.f32 %v707, 0.5
          %v743 = vmul.f32 %v709, 0.5
          %v744 = vmul.f32 %v711, 0.5
          %v745 = vmul.f32 %v635, 0.70710677
          %v746 = vmul.f32 %v637, 0.70710677
          %v747 = vmul.f32 %v639, 0.70710677
          %v748 = vmul.f32 %v641, 0.70710677
          %v749 = vmul.f32 %v645, 0.70710677
          %v750 = vmul.f32 %v647, 0.70710677
          %v751 = vmul.f32 %v649, 0.70710677
          %v752 = vmul.f32 %v651, 0.70710677
          %v753 = vmul.f32 %v655, 0.70710677
          %v754 = vmul.f32 %v657, 0.70710677
          %v755 = vmul.f32 %v659, 0.70710677
          %v756 = vmul.f32 %v661, 0.70710677
          %v757 = vmul.f32 %v665, 0.70710677
          %v758 = vmul.f32 %v667, 0.70710677
          %v759 = vmul.f32 %v669, 0.70710677
          %v760 = vmul.f32 %v671, 0.70710677
          %v761 = vmul.f32 %v675, 0.70710677
          %v762 = vmul.f32 %v677, 0.70710677
          %v763 = vmul.f32 %v679, 0.70710677
          %v764 = vmul.f32 %v681, 0.70710677
          %v765 = vmul.f32 %v685, 0.70710677
          %v766 = vmul.f32 %v687, 0.70710677
          %v767 = vmul.f32 %v689, 0.70710677
          %v768 = vmul.f32 %v691, 0.70710677
          %v769 = vmul.f32 %v695, 0.70710677
          %v770 = vmul.f32 %v697, 0.70710677
          %v771 = vmul.f32 %v699, 0.70710677
          %v772 = vmul.f32 %v701, 0.70710677
          %v773 = vmul.f32 %v705, 0.70710677
          %v774 = vmul.f32 %v707, 0.70710677
          %v775 = vmul.f32 %v709, 0.70710677
          %v776 = vmul.f32 %v711, 0.70710677
          %v777 = verf.f32.pop %v745
          %v778 = verf.f32.pop %v746
          %v779 = verf.f32.pop %v747
          %v780 = verf.f32.pop %v748
          %v781 = verf.f32.pop %v749
          %v782 = verf.f32.pop %v750
          %v783 = verf.f32.pop %v751
          %v784 = verf.f32.pop %v752
          %v785 = verf.f32.pop %v753
          %v786 = verf.f32.pop %v754
          %v787 = verf.f32.pop %v755
          %v788 = verf.f32.pop %v756
          %v789 = verf.f32.pop %v757
          %v790 = verf.f32.pop %v758
          %v791 = verf.f32.pop %v759
          %v792 = verf.f32.pop %v760
          %v793 = verf.f32.pop %v761
          %v794 = verf.f32.pop %v762
          %v795 = verf.f32.pop %v763
          %v796 = verf.f32.pop %v764
          %v797 = verf.f32.pop %v765
          %v798 = verf.f32.pop %v766
          %v799 = verf.f32.pop %v767
          %v800 = verf.f32.pop %v768
          %v801 = verf.f32.pop %v769
          %v802 = verf.f32.pop %v770
          %v803 = verf.f32.pop %v771
          %v804 = verf.f32.pop %v772
          %v805 = verf.f32.pop %v773
          %v806 = verf.f32.pop %v774
          %v807 = verf.f32.pop %v775
          %v808 = verf.f32.pop %v776
          %v809 = vadd.f32 %v777, 1.0
          %v810 = vadd.f32 %v778, 1.0
          %v811 = vadd.f32 %v779, 1.0
          %v812 = vadd.f32 %v780, 1.0
          %v813 = vadd.f32 %v781, 1.0
          %v814 = vadd.f32 %v782, 1.0
          %v815 = vadd.f32 %v783, 1.0
          %v816 = vadd.f32 %v784, 1.0
          %v817 = vadd.f32 %v785, 1.0
          %v818 = vadd.f32 %v786, 1.0
          %v819 = vadd.f32 %v787, 1.0
          %v820 = vadd.f32 %v788, 1.0
          %v821 = vadd.f32 %v789, 1.0
          %v822 = vadd.f32 %v790, 1.0
          %v823 = vadd.f32 %v791, 1.0
          %v824 = vadd.f32 %v792, 1.0
          %v825 = vadd.f32 %v793, 1.0
          %v826 = vadd.f32 %v794, 1.0
          %v827 = vadd.f32 %v795, 1.0
          %v828 = vadd.f32 %v796, 1.0
          %v829 = vadd.f32 %v797, 1.0
          %v830 = vadd.f32 %v798, 1.0
          %v831 = vadd.f32 %v799, 1.0
          %v832 = vadd.f32 %v800, 1.0
          %v833 = vadd.f32 %v801, 1.0
          %v834 = vadd.f32 %v802, 1.0
          %v835 = vadd.f32 %v803, 1.0
          %v836 = vadd.f32 %v804, 1.0
          %v837 = vadd.f32 %v805, 1.0
          %v838 = vadd.f32 %v806, 1.0
          %v839 = vadd.f32 %v807, 1.0
          %v840 = vadd.f32 %v808, 1.0
          %v841 = vmul.f32 %v713, %v809
          %v842 = vmul.f32 %v714, %v810
          %v843 = vmul.f32 %v715, %v811
          %v844 = vmul.f32 %v716, %v812
          %v845 = vmul.f32 %v717, %v813
          %v846 = vmul.f32 %v718, %v814
          %v847 = vmul.f32 %v719, %v815
          %v848 = vmul.f32 %v720, %v816
          %v849 = vmul.f32 %v721, %v817
          %v850 = vmul.f32 %v722, %v818
          %v851 = vmul.f32 %v723, %v819
          %v852 = vmul.f32 %v724, %v820
          %v853 = vmul.f32 %v725, %v821
          %v854 = vmul.f32 %v726, %v822
          %v855 = vmul.f32 %v727, %v823
          %v856 = vmul.f32 %v728, %v824
          %v857 = vmul.f32 %v729, %v825
          %v858 = vmul.f32 %v730, %v826
          %v859 = vmul.f32 %v731, %v827
          %v860 = vmul.f32 %v732, %v828
          %v861 = vmul.f32 %v733, %v829
          %v862 = vmul.f32 %v734, %v830
          %v863 = vmul.f32 %v735, %v831
          %v864 = vmul.f32 %v736, %v832
          %v865 = vmul.f32 %v737, %v833
          %v866 = vmul.f32 %v738, %v834
          %v867 = vmul.f32 %v739, %v835
          %v868 = vmul.f32 %v740, %v836
          %v869 = vmul.f32 %v741, %v837
          %v870 = vmul.f32 %v742, %v838
          %v871 = vmul.f32 %v743, %v839
          %v872 = vmul.f32 %v744, %v840
          %v873 = vpack.c.bf16 %v843, %v841
          %v874 = vpack.c.bf16 %v844, %v842
          %v875 = vpack.c.bf16 %v847, %v845
          %v876 = vpack.c.bf16 %v848, %v846
          %v877 = vpack.c.bf16 %v851, %v849
          %v878 = vpack.c.bf16 %v852, %v850
          %v879 = vpack.c.bf16 %v855, %v853
          %v880 = vpack.c.bf16 %v856, %v854
          %v881 = vpack.c.bf16 %v859, %v857
          %v882 = vpack.c.bf16 %v860, %v858
          %v883 = vpack.c.bf16 %v863, %v861
          %v884 = vpack.c.bf16 %v864, %v862
          %v885 = vpack.c.bf16 %v867, %v865
          %v886 = vpack.c.bf16 %v868, %v866
          %v887 = vpack.c.bf16 %v871, %v869
          %v888 = vpack.c.bf16 %v872, %v870
          %v889 = vld [vmem:[#allocation8] sm:$0xff]
          %v890 = vld [vmem:[#allocation8 + $0x8] sm:$0xff]
          %v891 = vld [vmem:[#allocation8 + $0x10] sm:$0xff]
          %v892 = vld [vmem:[#allocation8 + $0x18] sm:$0xff]
          %v893 = vld [vmem:[#allocation8 + $0x20] sm:$0xff]
          %v894 = vld [vmem:[#allocation8 + $0x28] sm:$0xff]
          %v895 = vld [vmem:[#allocation8 + $0x30] sm:$0xff]
          %v896 = vld [vmem:[#allocation8 + $0x38] sm:$0xff]
          %v897 = vld [vmem:[#allocation8 + $0x40] sm:$0xff]
          %v898 = vld [vmem:[#allocation8 + $0x48] sm:$0xff]
          %v899 = vld [vmem:[#allocation8 + $0x50] sm:$0xff]
          %v900 = vld [vmem:[#allocation8 + $0x58] sm:$0xff]
          %v901 = vld [vmem:[#allocation8 + $0x60] sm:$0xff]
          %v902 = vld [vmem:[#allocation8 + $0x68] sm:$0xff]
          %v903 = vld [vmem:[#allocation8 + $0x70] sm:$0xff]
          %v904 = vld [vmem:[#allocation8 + $0x78] sm:$0xff]
          %v905 = vld [vmem:[#allocation8 + $0x80] sm:$0xff]
          %v906 = vld [vmem:[#allocation8 + $0x88] sm:$0xff]
          %v907 = vld [vmem:[#allocation8 + $0x90] sm:$0xff]
          %v908 = vld [vmem:[#allocation8 + $0x98] sm:$0xff]
          %v909 = vld [vmem:[#allocation8 + $0xa0] sm:$0xff]
          %v910 = vld [vmem:[#allocation8 + $0xa8] sm:$0xff]
          %v911 = vld [vmem:[#allocation8 + $0xb0] sm:$0xff]
          %v912 = vld [vmem:[#allocation8 + $0xb8] sm:$0xff]
          %v913 = vld [vmem:[#allocation8 + $0xc0] sm:$0xff]
          %v914 = vld [vmem:[#allocation8 + $0xc8] sm:$0xff]
          %v915 = vld [vmem:[#allocation8 + $0xd0] sm:$0xff]
          %v916 = vld [vmem:[#allocation8 + $0xd8] sm:$0xff]
          %v917 = vld [vmem:[#allocation8 + $0xe0] sm:$0xff]
          %v918 = vld [vmem:[#allocation8 + $0xe8] sm:$0xff]
          %v919 = vld [vmem:[#allocation8 + $0xf0] sm:$0xff]
          %v920 = vld [vmem:[#allocation8 + $0xf8] sm:$0xff]
          %v921 = vld [vmem:[%s4] sm:$0x3]
          %v923 = vlaneseq
          %v924 = vshrl.u32 %v923, 7
          %v925 = vsub.s32 0, %v924
          %v926 = vrot.slane %v921, %v925
          %v927 = vlaneseq
          %v928 = vshrl.u32 %v927, 7
          %v929 = vsub.s32 1, %v928
          %v930 = vrot.slane %v921, %v929
          %v965 = vunpack.c.l.b16 %v889
          %v966 = vunpack.c.h.b16 %v889
          %v967 = vunpack.c.l.b16 %v890
          %v968 = vunpack.c.h.b16 %v890
          %v969 = vunpack.c.l.b16 %v891
          %v970 = vunpack.c.h.b16 %v891
          %v971 = vunpack.c.l.b16 %v892
          %v972 = vunpack.c.h.b16 %v892
          %v973 = vunpack.c.l.b16 %v893
          %v974 = vunpack.c.h.b16 %v893
          %v975 = vunpack.c.l.b16 %v894
          %v976 = vunpack.c.h.b16 %v894
          %v977 = vunpack.c.l.b16 %v895
          %v978 = vunpack.c.h.b16 %v895
          %v979 = vunpack.c.l.b16 %v896
          %v980 = vunpack.c.h.b16 %v896
          %v981 = vunpack.c.l.b16 %v897
          %v982 = vunpack.c.h.b16 %v897
          %v983 = vunpack.c.l.b16 %v898
          %v984 = vunpack.c.h.b16 %v898
          %v985 = vunpack.c.l.b16 %v899
          %v986 = vunpack.c.h.b16 %v899
          %v987 = vunpack.c.l.b16 %v900
          %v988 = vunpack.c.h.b16 %v900
          %v989 = vunpack.c.l.b16 %v901
          %v990 = vunpack.c.h.b16 %v901
          %v991 = vunpack.c.l.b16 %v902
          %v992 = vunpack.c.h.b16 %v902
          %v993 = vunpack.c.l.b16 %v903
          %v994 = vunpack.c.h.b16 %v903
          %v995 = vunpack.c.l.b16 %v904
          %v996 = vunpack.c.h.b16 %v904
          %v997 = vunpack.c.l.b16 %v905
          %v998 = vunpack.c.h.b16 %v905
          %v999 = vunpack.c.l.b16 %v906
          %v1000 = vunpack.c.h.b16 %v906
          %v1001 = vunpack.c.l.b16 %v907
          %v1002 = vunpack.c.h.b16 %v907
          %v1003 = vunpack.c.l.b16 %v908
          %v1004 = vunpack.c.h.b16 %v908
          %v1005 = vunpack.c.l.b16 %v909
          %v1006 = vunpack.c.h.b16 %v909
          %v1007 = vunpack.c.l.b16 %v910
          %v1008 = vunpack.c.h.b16 %v910
          %v1009 = vunpack.c.l.b16 %v911
          %v1010 = vunpack.c.h.b16 %v911
          %v1011 = vunpack.c.l.b16 %v912
          %v1012 = vunpack.c.h.b16 %v912
          %v1013 = vunpack.c.l.b16 %v913
          %v1014 = vunpack.c.h.b16 %v913
          %v1015 = vunpack.c.l.b16 %v914
          %v1016 = vunpack.c.h.b16 %v914
          %v1017 = vunpack.c.l.b16 %v915
          %v1018 = vunpack.c.h.b16 %v915
          %v1019 = vunpack.c.l.b16 %v916
          %v1020 = vunpack.c.h.b16 %v916
          %v1021 = vunpack.c.l.b16 %v917
          %v1022 = vunpack.c.h.b16 %v917
          %v1023 = vunpack.c.l.b16 %v918
          %v1024 = vunpack.c.h.b16 %v918
          %v1025 = vunpack.c.l.b16 %v919
          %v1026 = vunpack.c.h.b16 %v919
          %v1027 = vunpack.c.l.b16 %v920
          %v1028 = vunpack.c.h.b16 %v920
          %v1029 = vpack.c.b16 %v967, %v965
          %v1030 = vpack.c.b16 %v968, %v966
          %v1031 = vpack.c.b16 %v971, %v969
          %v1032 = vpack.c.b16 %v972, %v970
          %v1033 = vpack.c.b16 %v975, %v973
          %v1034 = vpack.c.b16 %v976, %v974
          %v1035 = vpack.c.b16 %v979, %v977
          %v1036 = vpack.c.b16 %v980, %v978
          %v1037 = vpack.c.b16 %v983, %v981
          %v1038 = vpack.c.b16 %v984, %v982
          %v1039 = vpack.c.b16 %v987, %v985
          %v1040 = vpack.c.b16 %v988, %v986
          %v1041 = vpack.c.b16 %v991, %v989
          %v1042 = vpack.c.b16 %v992, %v990
          %v1043 = vpack.c.b16 %v995, %v993
          %v1044 = vpack.c.b16 %v996, %v994
          %v1045 = vpack.c.b16 %v999, %v997
          %v1046 = vpack.c.b16 %v1000, %v998
          %v1047 = vpack.c.b16 %v1003, %v1001
          %v1048 = vpack.c.b16 %v1004, %v1002
          %v1049 = vpack.c.b16 %v1007, %v1005
          %v1050 = vpack.c.b16 %v1008, %v1006
          %v1051 = vpack.c.b16 %v1011, %v1009
          %v1052 = vpack.c.b16 %v1012, %v1010
          %v1053 = vpack.c.b16 %v1015, %v1013
          %v1054 = vpack.c.b16 %v1016, %v1014
          %v1055 = vpack.c.b16 %v1019, %v1017
          %v1056 = vpack.c.b16 %v1020, %v1018
          %v1057 = vpack.c.b16 %v1023, %v1021
          %v1058 = vpack.c.b16 %v1024, %v1022
          %v1059 = vpack.c.b16 %v1027, %v1025
          %v1060 = vpack.c.b16 %v1028, %v1026
          %1093 = vmatprep.subr.bf16.mxu0 %v1044
          %1094 = vmatpush1.bf16.msra.mxu0 %v1043
          %1095 = vmatprep.subr.bf16.mxu0 %v1042
          %1096 = vmatpush1.bf16.msra.mxu0 %v1041
          %1097 = vmatprep.subr.bf16.mxu0 %v1040
          %1098 = vmatpush1.bf16.msra.mxu0 %v1039
          %1099 = vmatprep.subr.bf16.mxu0 %v1038
          %1100 = vmatpush1.bf16.msra.mxu0 %v1037
          %1101 = vmatprep.subr.bf16.mxu0 %v1036
          %1102 = vmatpush1.bf16.msra.mxu0 %v1035
          %1103 = vmatprep.subr.bf16.mxu0 %v1034
          %1104 = vmatpush1.bf16.msra.mxu0 %v1033
          %1105 = vmatprep.subr.bf16.mxu0 %v1032
          %1106 = vmatpush1.bf16.msra.mxu0 %v1031
          %1107 = vmatprep.subr.bf16.mxu0 %v1030
          %1108 = vmatpush1.bf16.msra.mxu0 %v1029
          %1109 = vmatprep.subr.bf16.mxu0 %v1060
          %1110 = vmatpush2.bf16.msra.mxu0 %v1059
          %1111 = vmatprep.subr.bf16.mxu0 %v1058
          %1112 = vmatpush2.bf16.msra.mxu0 %v1057
          %1113 = vmatprep.subr.bf16.mxu0 %v1056
          %1114 = vmatpush2.bf16.msra.mxu0 %v1055
          %1115 = vmatprep.subr.bf16.mxu0 %v1054
          %1116 = vmatpush2.bf16.msra.mxu0 %v1053
          %1117 = vmatprep.subr.bf16.mxu0 %v1052
          %1118 = vmatpush2.bf16.msra.mxu0 %v1051
          %1119 = vmatprep.subr.bf16.mxu0 %v1050
          %1120 = vmatpush2.bf16.msra.mxu0 %v1049
          %1121 = vmatprep.subr.bf16.mxu0 %v1048
          %1122 = vmatpush2.bf16.msra.mxu0 %v1047
          %1123 = vmatprep.subr.bf16.mxu0 %v1046
          %1124 = vmatpush2.bf16.msra.mxu0 %v1045
          %1125 = vmatprep.mubr.bf16.mxu0 %v874
          %1126 = vmatmul.mubr.bf16.gmra.mxu0 %v873
          %v1127 = vpop.f32.mrf.mxu0
          %v1128 = vadd.f32 %v926, %v1127
          %v1129 = vpop.f32.mrf.mxu0
          %v1130 = vadd.f32 %v930, %v1129
          %v1131 = vpop.f32.mrf.mxu0
          %v1132 = vadd.f32 %v926, %v1131
          %v1133 = vpop.f32.mrf.mxu0
          %v1134 = vadd.f32 %v930, %v1133
          %1135 = vmatprep.mubr.bf16.mxu0 %v876
          %1136 = vmatmul.mubr.bf16.gmra.mxu0 %v875
          %v1137 = vpop.f32.mrf.mxu0
          %v1138 = vadd.f32 %v926, %v1137
          %v1139 = vpop.f32.mrf.mxu0
          %v1140 = vadd.f32 %v930, %v1139
          %v1141 = vpop.f32.mrf.mxu0
          %v1142 = vadd.f32 %v926, %v1141
          %v1143 = vpop.f32.mrf.mxu0
          %v1144 = vadd.f32 %v930, %v1143
          %1145 = vmatprep.mubr.bf16.mxu0 %v878
          %1146 = vmatmul.mubr.bf16.gmra.mxu0 %v877
          %v1147 = vpop.f32.mrf.mxu0
          %v1148 = vadd.f32 %v926, %v1147
          %v1149 = vpop.f32.mrf.mxu0
          %v1150 = vadd.f32 %v930, %v1149
          %v1151 = vpop.f32.mrf.mxu0
          %v1152 = vadd.f32 %v926, %v1151
          %v1153 = vpop.f32.mrf.mxu0
          %v1154 = vadd.f32 %v930, %v1153
          %1155 = vmatprep.mubr.bf16.mxu0 %v880
          %1156 = vmatmul.mubr.bf16.gmra.mxu0 %v879
          %v1157 = vpop.f32.mrf.mxu0
          %v1158 = vadd.f32 %v926, %v1157
          %v1159 = vpop.f32.mrf.mxu0
          %v1160 = vadd.f32 %v930, %v1159
          %v1161 = vpop.f32.mrf.mxu0
          %v1162 = vadd.f32 %v926, %v1161
          %v1163 = vpop.f32.mrf.mxu0
          %v1164 = vadd.f32 %v930, %v1163
          %1165 = vmatprep.mubr.bf16.mxu0 %v882
          %1166 = vmatmul.mubr.bf16.gmra.mxu0 %v881
          %v1167 = vpop.f32.mrf.mxu0
          %v1168 = vadd.f32 %v926, %v1167
          %v1169 = vpop.f32.mrf.mxu0
          %v1170 = vadd.f32 %v930, %v1169
          %v1171 = vpop.f32.mrf.mxu0
          %v1172 = vadd.f32 %v926, %v1171
          %v1173 = vpop.f32.mrf.mxu0
          %v1174 = vadd.f32 %v930, %v1173
          %1175 = vmatprep.mubr.bf16.mxu0 %v884
          %1176 = vmatmul.mubr.bf16.gmra.mxu0 %v883
          %v1177 = vpop.f32.mrf.mxu0
          %v1178 = vadd.f32 %v926, %v1177
          %v1179 = vpop.f32.mrf.mxu0
          %v1180 = vadd.f32 %v930, %v1179
          %v1181 = vpop.f32.mrf.mxu0
          %v1182 = vadd.f32 %v926, %v1181
          %v1183 = vpop.f32.mrf.mxu0
          %v1184 = vadd.f32 %v930, %v1183
          %1185 = vmatprep.mubr.bf16.mxu0 %v886
          %1186 = vmatmul.mubr.bf16.gmra.mxu0 %v885
          %v1187 = vpop.f32.mrf.mxu0
          %v1188 = vadd.f32 %v926, %v1187
          %v1189 = vpop.f32.mrf.mxu0
          %v1190 = vadd.f32 %v930, %v1189
          %v1191 = vpop.f32.mrf.mxu0
          %v1192 = vadd.f32 %v926, %v1191
          %v1193 = vpop.f32.mrf.mxu0
          %v1194 = vadd.f32 %v930, %v1193
          %1195 = vmatprep.mubr.bf16.mxu0 %v888
          %1196 = vmatmul.mubr.bf16.gmra.mxu0 %v887
          %v1197 = vpop.f32.mrf.mxu0
          %v1198 = vadd.f32 %v926, %v1197
          %v1199 = vpop.f32.mrf.mxu0
          %v1200 = vadd.f32 %v930, %v1199
          %v1201 = vpop.f32.mrf.mxu0
          %v1202 = vadd.f32 %v926, %v1201
          %v1203 = vpop.f32.mrf.mxu0
          %v1204 = vadd.f32 %v930, %v1203
          %1205 = vdwg.mxu0
          %v1206 = vmul.f32 %v1128, 0.5
          %v1207 = vmul.f32 %v1130, 0.5
          %v1208 = vmul.f32 %v1132, 0.5
          %v1209 = vmul.f32 %v1134, 0.5
          %v1210 = vmul.f32 %v1138, 0.5
          %v1211 = vmul.f32 %v1140, 0.5
          %v1212 = vmul.f32 %v1142, 0.5
          %v1213 = vmul.f32 %v1144, 0.5
          %v1214 = vmul.f32 %v1148, 0.5
          %v1215 = vmul.f32 %v1150, 0.5
          %v1216 = vmul.f32 %v1152, 0.5
          %v1217 = vmul.f32 %v1154, 0.5
          %v1218 = vmul.f32 %v1158, 0.5
          %v1219 = vmul.f32 %v1160, 0.5
          %v1220 = vmul.f32 %v1162, 0.5
          %v1221 = vmul.f32 %v1164, 0.5
          %v1222 = vmul.f32 %v1168, 0.5
          %v1223 = vmul.f32 %v1170, 0.5
          %v1224 = vmul.f32 %v1172, 0.5
          %v1225 = vmul.f32 %v1174, 0.5
          %v1226 = vmul.f32 %v1178, 0.5
          %v1227 = vmul.f32 %v1180, 0.5
          %v1228 = vmul.f32 %v1182, 0.5
          %v1229 = vmul.f32 %v1184, 0.5
          %v1230 = vmul.f32 %v1188, 0.5
          %v1231 = vmul.f32 %v1190, 0.5
          %v1232 = vmul.f32 %v1192, 0.5
          %v1233 = vmul.f32 %v1194, 0.5
          %v1234 = vmul.f32 %v1198, 0.5
          %v1235 = vmul.f32 %v1200, 0.5
          %v1236 = vmul.f32 %v1202, 0.5
          %v1237 = vmul.f32 %v1204, 0.5
          %v1238 = vmul.f32 %v1128, 0.70710677
          %v1239 = vmul.f32 %v1130, 0.70710677
          %v1240 = vmul.f32 %v1132, 0.70710677
          %v1241 = vmul.f32 %v1134, 0.70710677
          %v1242 = vmul.f32 %v1138, 0.70710677
          %v1243 = vmul.f32 %v1140, 0.70710677
          %v1244 = vmul.f32 %v1142, 0.70710677
          %v1245 = vmul.f32 %v1144, 0.70710677
          %v1246 = vmul.f32 %v1148, 0.70710677
          %v1247 = vmul.f32 %v1150, 0.70710677
          %v1248 = vmul.f32 %v1152, 0.70710677
          %v1249 = vmul.f32 %v1154, 0.70710677
          %v1250 = vmul.f32 %v1158, 0.70710677
          %v1251 = vmul.f32 %v1160, 0.70710677
          %v1252 = vmul.f32 %v1162, 0.70710677
          %v1253 = vmul.f32 %v1164, 0.70710677
          %v1254 = vmul.f32 %v1168, 0.70710677
          %v1255 = vmul.f32 %v1170, 0.70710677
          %v1256 = vmul.f32 %v1172, 0.70710677
          %v1257 = vmul.f32 %v1174, 0.70710677
          %v1258 = vmul.f32 %v1178, 0.70710677
          %v1259 = vmul.f32 %v1180, 0.70710677
          %v1260 = vmul.f32 %v1182, 0.70710677
          %v1261 = vmul.f32 %v1184, 0.70710677
          %v1262 = vmul.f32 %v1188, 0.70710677
          %v1263 = vmul.f32 %v1190, 0.70710677
          %v1264 = vmul.f32 %v1192, 0.70710677
          %v1265 = vmul.f32 %v1194, 0.70710677
          %v1266 = vmul.f32 %v1198, 0.70710677
          %v1267 = vmul.f32 %v1200, 0.70710677
          %v1268 = vmul.f32 %v1202, 0.70710677
          %v1269 = vmul.f32 %v1204, 0.70710677
          %v1270 = verf.f32.pop %v1238
          %v1271 = verf.f32.pop %v1239
          %v1272 = verf.f32.pop %v1240
          %v1273 = verf.f32.pop %v1241
          %v1274 = verf.f32.pop %v1242
          %v1275 = verf.f32.pop %v1243
          %v1276 = verf.f32.pop %v1244
          %v1277 = verf.f32.pop %v1245
          %v1278 = verf.f32.pop %v1246
          %v1279 = verf.f32.pop %v1247
          %v1280 = verf.f32.pop %v1248
          %v1281 = verf.f32.pop %v1249
          %v1282 = verf.f32.pop %v1250
          %v1283 = verf.f32.pop %v1251
          %v1284 = verf.f32.pop %v1252
          %v1285 = verf.f32.pop %v1253
          %v1286 = verf.f32.pop %v1254
          %v1287 = verf.f32.pop %v1255
          %v1288 = verf.f32.pop %v1256
          %v1289 = verf.f32.pop %v1257
          %v1290 = verf.f32.pop %v1258
          %v1291 = verf.f32.pop %v1259
          %v1292 = verf.f32.pop %v1260
          %v1293 = verf.f32.pop %v1261
          %v1294 = verf.f32.pop %v1262
          %v1295 = verf.f32.pop %v1263
          %v1296 = verf.f32.pop %v1264
          %v1297 = verf.f32.pop %v1265
          %v1298 = verf.f32.pop %v1266
          %v1299 = verf.f32.pop %v1267
          %v1300 = verf.f32.pop %v1268
          %v1301 = verf.f32.pop %v1269
          %v1302 = vadd.f32 %v1270, 1.0
          %v1303 = vadd.f32 %v1271, 1.0
          %v1304 = vadd.f32 %v1272, 1.0
          %v1305 = vadd.f32 %v1273, 1.0
          %v1306 = vadd.f32 %v1274, 1.0
          %v1307 = vadd.f32 %v1275, 1.0
          %v1308 = vadd.f32 %v1276, 1.0
          %v1309 = vadd.f32 %v1277, 1.0
          %v1310 = vadd.f32 %v1278, 1.0
          %v1311 = vadd.f32 %v1279, 1.0
          %v1312 = vadd.f32 %v1280, 1.0
          %v1313 = vadd.f32 %v1281, 1.0
          %v1314 = vadd.f32 %v1282, 1.0
          %v1315 = vadd.f32 %v1283, 1.0
          %v1316 = vadd.f32 %v1284, 1.0
          %v1317 = vadd.f32 %v1285, 1.0
          %v1318 = vadd.f32 %v1286, 1.0
          %v1319 = vadd.f32 %v1287, 1.0
          %v1320 = vadd.f32 %v1288, 1.0
          %v1321 = vadd.f32 %v1289, 1.0
          %v1322 = vadd.f32 %v1290, 1.0
          %v1323 = vadd.f32 %v1291, 1.0
          %v1324 = vadd.f32 %v1292, 1.0
          %v1325 = vadd.f32 %v1293, 1.0
          %v1326 = vadd.f32 %v1294, 1.0
          %v1327 = vadd.f32 %v1295, 1.0
          %v1328 = vadd.f32 %v1296, 1.0
          %v1329 = vadd.f32 %v1297, 1.0
          %v1330 = vadd.f32 %v1298, 1.0
          %v1331 = vadd.f32 %v1299, 1.0
          %v1332 = vadd.f32 %v1300, 1.0
          %v1333 = vadd.f32 %v1301, 1.0
          %v1334 = vmul.f32 %v1206, %v1302
          %v1335 = vmul.f32 %v1207, %v1303
          %v1336 = vmul.f32 %v1208, %v1304
          %v1337 = vmul.f32 %v1209, %v1305
          %v1338 = vmul.f32 %v1210, %v1306
          %v1339 = vmul.f32 %v1211, %v1307
          %v1340 = vmul.f32 %v1212, %v1308
          %v1341 = vmul.f32 %v1213, %v1309
          %v1342 = vmul.f32 %v1214, %v1310
          %v1343 = vmul.f32 %v1215, %v1311
          %v1344 = vmul.f32 %v1216, %v1312
          %v1345 = vmul.f32 %v1217, %v1313
          %v1346 = vmul.f32 %v1218, %v1314
          %v1347 = vmul.f32 %v1219, %v1315
          %v1348 = vmul.f32 %v1220, %v1316
          %v1349 = vmul.f32 %v1221, %v1317
          %v1350 = vmul.f32 %v1222, %v1318
          %v1351 = vmul.f32 %v1223, %v1319
          %v1352 = vmul.f32 %v1224, %v1320
          %v1353 = vmul.f32 %v1225, %v1321
          %v1354 = vmul.f32 %v1226, %v1322
          %v1355 = vmul.f32 %v1227, %v1323
          %v1356 = vmul.f32 %v1228, %v1324
          %v1357 = vmul.f32 %v1229, %v1325
          %v1358 = vmul.f32 %v1230, %v1326
          %v1359 = vmul.f32 %v1231, %v1327
          %v1360 = vmul.f32 %v1232, %v1328
          %v1361 = vmul.f32 %v1233, %v1329
          %v1362 = vmul.f32 %v1234, %v1330
          %v1363 = vmul.f32 %v1235, %v1331
          %v1364 = vmul.f32 %v1236, %v1332
          %v1365 = vmul.f32 %v1237, %v1333
          %v1366 = vpack.c.bf16 %v1336, %v1334
          %v1367 = vpack.c.bf16 %v1337, %v1335
          %v1368 = vpack.c.bf16 %v1340, %v1338
          %v1369 = vpack.c.bf16 %v1341, %v1339
          %v1370 = vpack.c.bf16 %v1344, %v1342
          %v1371 = vpack.c.bf16 %v1345, %v1343
          %v1372 = vpack.c.bf16 %v1348, %v1346
          %v1373 = vpack.c.bf16 %v1349, %v1347
          %v1374 = vpack.c.bf16 %v1352, %v1350
          %v1375 = vpack.c.bf16 %v1353, %v1351
          %v1376 = vpack.c.bf16 %v1356, %v1354
          %v1377 = vpack.c.bf16 %v1357, %v1355
          %v1378 = vpack.c.bf16 %v1360, %v1358
          %v1379 = vpack.c.bf16 %v1361, %v1359
          %v1380 = vpack.c.bf16 %v1364, %v1362
          %v1381 = vpack.c.bf16 %v1365, %v1363
          %v1382 = vld [vmem:[#allocation9] sm:$0xf]
          %v1383 = vld [vmem:[#allocation9 + $0x4] sm:$0xf]
          %v1384 = vld [vmem:[#allocation9 + $0x8] sm:$0xf]
          %v1385 = vld [vmem:[#allocation9 + $0xc] sm:$0xf]
          %v1386 = vld [vmem:[#allocation9 + $0x10] sm:$0xf]
          %v1387 = vld [vmem:[#allocation9 + $0x14] sm:$0xf]
          %v1388 = vld [vmem:[#allocation9 + $0x18] sm:$0xf]
          %v1389 = vld [vmem:[#allocation9 + $0x1c] sm:$0xf]
          %v1390 = vld [vmem:[#allocation9 + $0x20] sm:$0xf]
          %v1391 = vld [vmem:[#allocation9 + $0x24] sm:$0xf]
          %v1392 = vld [vmem:[#allocation9 + $0x28] sm:$0xf]
          %v1393 = vld [vmem:[#allocation9 + $0x2c] sm:$0xf]
          %v1394 = vld [vmem:[#allocation9 + $0x30] sm:$0xf]
          %v1395 = vld [vmem:[#allocation9 + $0x34] sm:$0xf]
          %v1396 = vld [vmem:[#allocation9 + $0x38] sm:$0xf]
          %v1397 = vld [vmem:[#allocation9 + $0x3c] sm:$0xf]
          %v1398 = vld [vmem:[#allocation9 + $0x40] sm:$0xf]
          %v1399 = vld [vmem:[#allocation9 + $0x44] sm:$0xf]
          %v1400 = vld [vmem:[#allocation9 + $0x48] sm:$0xf]
          %v1401 = vld [vmem:[#allocation9 + $0x4c] sm:$0xf]
          %v1402 = vld [vmem:[#allocation9 + $0x50] sm:$0xf]
          %v1403 = vld [vmem:[#allocation9 + $0x54] sm:$0xf]
          %v1404 = vld [vmem:[#allocation9 + $0x58] sm:$0xf]
          %v1405 = vld [vmem:[#allocation9 + $0x5c] sm:$0xf]
          %v1406 = vld [vmem:[#allocation9 + $0x60] sm:$0xf]
          %v1407 = vld [vmem:[#allocation9 + $0x64] sm:$0xf]
          %v1408 = vld [vmem:[#allocation9 + $0x68] sm:$0xf]
          %v1409 = vld [vmem:[#allocation9 + $0x6c] sm:$0xf]
          %v1410 = vld [vmem:[#allocation9 + $0x70] sm:$0xf]
          %v1411 = vld [vmem:[#allocation9 + $0x74] sm:$0xf]
          %v1412 = vld [vmem:[#allocation9 + $0x78] sm:$0xf]
          %v1413 = vld [vmem:[#allocation9 + $0x7c] sm:$0xf]
          %v1414 = vld [vmem:[%s6] sm:$0x1]
          %v1416 = vlaneseq
          %v1417 = vshrl.u32 %v1416, 7
          %v1418 = vsub.s32 0, %v1417
          %v1419 = vrot.slane %v1414, %v1418
          %v1453 = vunpack.c.l.b16 %v1382
          %v1454 = vunpack.c.l.b16 %v1383
          %v1455 = vunpack.c.l.b16 %v1384
          %v1456 = vunpack.c.l.b16 %v1385
          %v1457 = vunpack.c.l.b16 %v1386
          %v1458 = vunpack.c.l.b16 %v1387
          %v1459 = vunpack.c.l.b16 %v1388
          %v1460 = vunpack.c.l.b16 %v1389
          %v1461 = vunpack.c.l.b16 %v1390
          %v1462 = vunpack.c.l.b16 %v1391
          %v1463 = vunpack.c.l.b16 %v1392
          %v1464 = vunpack.c.l.b16 %v1393
          %v1465 = vunpack.c.l.b16 %v1394
          %v1466 = vunpack.c.l.b16 %v1395
          %v1467 = vunpack.c.l.b16 %v1396
          %v1468 = vunpack.c.l.b16 %v1397
          %v1469 = vunpack.c.l.b16 %v1398
          %v1470 = vunpack.c.l.b16 %v1399
          %v1471 = vunpack.c.l.b16 %v1400
          %v1472 = vunpack.c.l.b16 %v1401
          %v1473 = vunpack.c.l.b16 %v1402
          %v1474 = vunpack.c.l.b16 %v1403
          %v1475 = vunpack.c.l.b16 %v1404
          %v1476 = vunpack.c.l.b16 %v1405
          %v1477 = vunpack.c.l.b16 %v1406
          %v1478 = vunpack.c.l.b16 %v1407
          %v1479 = vunpack.c.l.b16 %v1408
          %v1480 = vunpack.c.l.b16 %v1409
          %v1481 = vunpack.c.l.b16 %v1410
          %v1482 = vunpack.c.l.b16 %v1411
          %v1483 = vunpack.c.l.b16 %v1412
          %v1484 = vunpack.c.l.b16 %v1413
          %v1485 = vpack.c.b16 %v1454, %v1453
          %v1486 = vpack.c.b16 %v1456, %v1455
          %v1487 = vpack.c.b16 %v1458, %v1457
          %v1488 = vpack.c.b16 %v1460, %v1459
          %v1489 = vpack.c.b16 %v1462, %v1461
          %v1490 = vpack.c.b16 %v1464, %v1463
          %v1491 = vpack.c.b16 %v1466, %v1465
          %v1492 = vpack.c.b16 %v1468, %v1467
          %v1493 = vpack.c.b16 %v1470, %v1469
          %v1494 = vpack.c.b16 %v1472, %v1471
          %v1495 = vpack.c.b16 %v1474, %v1473
          %v1496 = vpack.c.b16 %v1476, %v1475
          %v1497 = vpack.c.b16 %v1478, %v1477
          %v1498 = vpack.c.b16 %v1480, %v1479
          %v1499 = vpack.c.b16 %v1482, %v1481
          %v1500 = vpack.c.b16 %v1484, %v1483
          %1517 = vmatprep.subr.bf16.mxu0 0
          %1518 = vmatpush1.bf16.msra.mxu0 %v1492
          %1519 = vmatprep.subr.bf16.mxu0 0
          %1520 = vmatpush1.bf16.msra.mxu0 %v1491
          %1521 = vmatprep.subr.bf16.mxu0 0
          %1522 = vmatpush1.bf16.msra.mxu0 %v1490
          %1523 = vmatprep.subr.bf16.mxu0 0
          %1524 = vmatpush1.bf16.msra.mxu0 %v1489
          %1525 = vmatprep.subr.bf16.mxu0 0
          %1526 = vmatpush1.bf16.msra.mxu0 %v1488
          %1527 = vmatprep.subr.bf16.mxu0 0
          %1528 = vmatpush1.bf16.msra.mxu0 %v1487
          %1529 = vmatprep.subr.bf16.mxu0 0
          %1530 = vmatpush1.bf16.msra.mxu0 %v1486
          %1531 = vmatprep.subr.bf16.mxu0 0
          %1532 = vmatpush1.bf16.msra.mxu0 %v1485
          %1533 = vmatprep.subr.bf16.mxu0 0
          %1534 = vmatpush2.bf16.msra.mxu0 %v1500
          %1535 = vmatprep.subr.bf16.mxu0 0
          %1536 = vmatpush2.bf16.msra.mxu0 %v1499
          %1537 = vmatprep.subr.bf16.mxu0 0
          %1538 = vmatpush2.bf16.msra.mxu0 %v1498
          %1539 = vmatprep.subr.bf16.mxu0 0
          %1540 = vmatpush2.bf16.msra.mxu0 %v1497
          %1541 = vmatprep.subr.bf16.mxu0 0
          %1542 = vmatpush2.bf16.msra.mxu0 %v1496
          %1543 = vmatprep.subr.bf16.mxu0 0
          %1544 = vmatpush2.bf16.msra.mxu0 %v1495
          %1545 = vmatprep.subr.bf16.mxu0 0
          %1546 = vmatpush2.bf16.msra.mxu0 %v1494
          %1547 = vmatprep.subr.bf16.mxu0 0
          %1548 = vmatpush2.bf16.msra.mxu0 %v1493
          %1549 = vmatprep.mubr.bf16.mxu0 %v1367
          %1550 = vmatmul.mubr.bf16.gmra.mxu0 %v1366
          %v1551 = vpop.f32.mrf.mxu0
          %v1552 = vadd.f32 %v1419, %v1551
          %v1553 = vpop.f32.mrf.mxu0
          %v1554 = vpop.f32.mrf.mxu0
          %v1555 = vadd.f32 %v1419, %v1554
          %v1556 = vpop.f32.mrf.mxu0
          %1557 = vmatprep.mubr.bf16.mxu0 %v1369
          %1558 = vmatmul.mubr.bf16.gmra.mxu0 %v1368
          %v1559 = vpop.f32.mrf.mxu0
          %v1560 = vadd.f32 %v1419, %v1559
          %v1561 = vpop.f32.mrf.mxu0
          %v1562 = vpop.f32.mrf.mxu0
          %v1563 = vadd.f32 %v1419, %v1562
          %v1564 = vpop.f32.mrf.mxu0
          %1565 = vmatprep.mubr.bf16.mxu0 %v1371
          %1566 = vmatmul.mubr.bf16.gmra.mxu0 %v1370
          %v1567 = vpop.f32.mrf.mxu0
          %v1568 = vadd.f32 %v1419, %v1567
          %v1569 = vpop.f32.mrf.mxu0
          %v1570 = vpop.f32.mrf.mxu0
          %v1571 = vadd.f32 %v1419, %v1570
          %v1572 = vpop.f32.mrf.mxu0
          %1573 = vmatprep.mubr.bf16.mxu0 %v1373
          %1574 = vmatmul.mubr.bf16.gmra.mxu0 %v1372
          %v1575 = vpop.f32.mrf.mxu0
          %v1576 = vadd.f32 %v1419, %v1575
          %v1577 = vpop.f32.mrf.mxu0
          %v1578 = vpop.f32.mrf.mxu0
          %v1579 = vadd.f32 %v1419, %v1578
          %v1580 = vpop.f32.mrf.mxu0
          %1581 = vmatprep.mubr.bf16.mxu0 %v1375
          %1582 = vmatmul.mubr.bf16.gmra.mxu0 %v1374
          %v1583 = vpop.f32.mrf.mxu0
          %v1584 = vadd.f32 %v1419, %v1583
          %v1585 = vpop.f32.mrf.mxu0
          %v1586 = vpop.f32.mrf.mxu0
          %v1587 = vadd.f32 %v1419, %v1586
          %v1588 = vpop.f32.mrf.mxu0
          %1589 = vmatprep.mubr.bf16.mxu0 %v1377
          %1590 = vmatmul.mubr.bf16.gmra.mxu0 %v1376
          %v1591 = vpop.f32.mrf.mxu0
          %v1592 = vadd.f32 %v1419, %v1591
          %v1593 = vpop.f32.mrf.mxu0
          %v1594 = vpop.f32.mrf.mxu0
          %v1595 = vadd.f32 %v1419, %v1594
          %v1596 = vpop.f32.mrf.mxu0
          %1597 = vmatprep.mubr.bf16.mxu0 %v1379
          %1598 = vmatmul.mubr.bf16.gmra.mxu0 %v1378
          %v1599 = vpop.f32.mrf.mxu0
          %v1600 = vadd.f32 %v1419, %v1599
          %v1601 = vpop.f32.mrf.mxu0
          %v1602 = vpop.f32.mrf.mxu0
          %v1603 = vadd.f32 %v1419, %v1602
          %v1604 = vpop.f32.mrf.mxu0
          %1605 = vmatprep.mubr.bf16.mxu0 %v1381
          %1606 = vmatmul.mubr.bf16.gmra.mxu0 %v1380
          %v1607 = vpop.f32.mrf.mxu0
          %v1608 = vadd.f32 %v1419, %v1607
          %v1609 = vpop.f32.mrf.mxu0
          %v1610 = vpop.f32.mrf.mxu0
          %v1611 = vadd.f32 %v1419, %v1610
          %v1612 = vpop.f32.mrf.mxu0
          %1613 = vdwg.mxu0
          %v1614 = vmul.f32 %v1552, %v1552
          %v1615 = vmul.f32 %v1555, %v1555
          %v1616 = vmul.f32 %v1560, %v1560
          %v1617 = vmul.f32 %v1563, %v1563
          %v1618 = vmul.f32 %v1568, %v1568
          %v1619 = vmul.f32 %v1571, %v1571
          %v1620 = vmul.f32 %v1576, %v1576
          %v1621 = vmul.f32 %v1579, %v1579
          %v1622 = vmul.f32 %v1584, %v1584
          %v1623 = vmul.f32 %v1587, %v1587
          %v1624 = vmul.f32 %v1592, %v1592
          %v1625 = vmul.f32 %v1595, %v1595
          %v1626 = vmul.f32 %v1600, %v1600
          %v1627 = vmul.f32 %v1603, %v1603
          %v1628 = vmul.f32 %v1608, %v1608
          %v1629 = vmul.f32 %v1611, %v1611
          %1630 = vadd.xlane.f32.xlu0 %v1614
          %v1631 = vpop.xlane.xlu0 %1630
          %1632 = vadd.xlane.f32.xlu0 %v1615
          %v1633 = vpop.xlane.xlu0 %1632
          %1634 = vadd.xlane.f32.xlu0 %v1616
          %v1635 = vpop.xlane.xlu0 %1634
          %1636 = vadd.xlane.f32.xlu0 %v1617
          %v1637 = vpop.xlane.xlu0 %1636
          %1638 = vadd.xlane.f32.xlu0 %v1618
          %v1639 = vpop.xlane.xlu0 %1638
          %1640 = vadd.xlane.f32.xlu0 %v1619
          %v1641 = vpop.xlane.xlu0 %1640
          %1642 = vadd.xlane.f32.xlu0 %v1620
          %v1643 = vpop.xlane.xlu0 %1642
          %1644 = vadd.xlane.f32.xlu0 %v1621
          %v1645 = vpop.xlane.xlu0 %1644
          %1646 = vadd.xlane.f32.xlu0 %v1622
          %v1647 = vpop.xlane.xlu0 %1646
          %1648 = vadd.xlane.f32.xlu0 %v1623
          %v1649 = vpop.xlane.xlu0 %1648
          %1650 = vadd.xlane.f32.xlu0 %v1624
          %v1651 = vpop.xlane.xlu0 %1650
          %1652 = vadd.xlane.f32.xlu0 %v1625
          %v1653 = vpop.xlane.xlu0 %1652
          %1654 = vadd.xlane.f32.xlu0 %v1626
          %v1655 = vpop.xlane.xlu0 %1654
          %1656 = vadd.xlane.f32.xlu0 %v1627
          %v1657 = vpop.xlane.xlu0 %1656
          %1658 = vadd.xlane.f32.xlu0 %v1628
          %v1659 = vpop.xlane.xlu0 %1658
          %1660 = vadd.xlane.f32.xlu0 %v1629
          %v1661 = vpop.xlane.xlu0 %1660
          %v1662 = vmax.f32 %v1631, 1e-24
          %v1663 = vmax.f32 %v1633, 1e-24
          %v1664 = vmax.f32 %v1635, 1e-24
          %v1665 = vmax.f32 %v1637, 1e-24
          %v1666 = vmax.f32 %v1639, 1e-24
          %v1667 = vmax.f32 %v1641, 1e-24
          %v1668 = vmax.f32 %v1643, 1e-24
          %v1669 = vmax.f32 %v1645, 1e-24
          %v1670 = vmax.f32 %v1647, 1e-24
          %v1671 = vmax.f32 %v1649, 1e-24
          %v1672 = vmax.f32 %v1651, 1e-24
          %v1673 = vmax.f32 %v1653, 1e-24
          %v1674 = vmax.f32 %v1655, 1e-24
          %v1675 = vmax.f32 %v1657, 1e-24
          %v1676 = vmax.f32 %v1659, 1e-24
          %v1677 = vmax.f32 %v1661, 1e-24
          %v1678 = vrsqrt.pop %v1662
          %v1679 = vrsqrt.pop %v1663
          %v1680 = vrsqrt.pop %v1664
          %v1681 = vrsqrt.pop %v1665
          %v1682 = vrsqrt.pop %v1666
          %v1683 = vrsqrt.pop %v1667
          %v1684 = vrsqrt.pop %v1668
          %v1685 = vrsqrt.pop %v1669
          %v1686 = vrsqrt.pop %v1670
          %v1687 = vrsqrt.pop %v1671
          %v1688 = vrsqrt.pop %v1672
          %v1689 = vrsqrt.pop %v1673
          %v1690 = vrsqrt.pop %v1674
          %v1691 = vrsqrt.pop %v1675
          %v1692 = vrsqrt.pop %v1676
          %v1693 = vrsqrt.pop %v1677
          %v1694 = vmul.f32 %v1552, %v1678
          %v1695 = vmul.f32 %v1555, %v1679
          %v1696 = vmul.f32 %v1560, %v1680
          %v1697 = vmul.f32 %v1563, %v1681
          %v1698 = vmul.f32 %v1568, %v1682
          %v1699 = vmul.f32 %v1571, %v1683
          %v1700 = vmul.f32 %v1576, %v1684
          %v1701 = vmul.f32 %v1579, %v1685
          %v1702 = vmul.f32 %v1584, %v1686
          %v1703 = vmul.f32 %v1587, %v1687
          %v1704 = vmul.f32 %v1592, %v1688
          %v1705 = vmul.f32 %v1595, %v1689
          %v1706 = vmul.f32 %v1600, %v1690
          %v1707 = vmul.f32 %v1603, %v1691
          %v1708 = vmul.f32 %v1608, %v1692
          %v1709 = vmul.f32 %v1611, %v1693
          %v1710 = vpack.c.bf16 %v1695, %v1694
          %v1711 = vpack.c.bf16 %v1697, %v1696
          %v1712 = vpack.c.bf16 %v1699, %v1698
          %v1713 = vpack.c.bf16 %v1701, %v1700
          %v1714 = vpack.c.bf16 %v1703, %v1702
          %v1715 = vpack.c.bf16 %v1705, %v1704
          %v1716 = vpack.c.bf16 %v1707, %v1706
          %v1717 = vpack.c.bf16 %v1709, %v1708
          %v1726 = vunpack.c.l.b16 %v1710
          %v1727 = vunpack.c.h.b16 %v1710
          %v1728 = vunpack.c.l.b16 %v1711
          %v1729 = vunpack.c.h.b16 %v1711
          %v1730 = vunpack.c.l.b16 %v1712
          %v1731 = vunpack.c.h.b16 %v1712
          %v1732 = vunpack.c.l.b16 %v1713
          %v1733 = vunpack.c.h.b16 %v1713
          %v1734 = vunpack.c.l.b16 %v1714
          %v1735 = vunpack.c.h.b16 %v1714
          %v1736 = vunpack.c.l.b16 %v1715
          %v1737 = vunpack.c.h.b16 %v1715
          %v1738 = vunpack.c.l.b16 %v1716
          %v1739 = vunpack.c.h.b16 %v1716
          %v1740 = vunpack.c.l.b16 %v1717
          %v1741 = vunpack.c.h.b16 %v1717
          %v1742 = vpack.c.b16 %v1726, %v1726
          %v1743 = vpack.c.b16 %v1727, %v1727
          %v1744 = vpack.c.b16 %v1728, %v1728
          %v1745 = vpack.c.b16 %v1729, %v1729
          %v1746 = vpack.c.b16 %v1730, %v1730
          %v1747 = vpack.c.b16 %v1731, %v1731
          %v1748 = vpack.c.b16 %v1732, %v1732
          %v1749 = vpack.c.b16 %v1733, %v1733
          %v1750 = vpack.c.b16 %v1734, %v1734
          %v1751 = vpack.c.b16 %v1735, %v1735
          %v1752 = vpack.c.b16 %v1736, %v1736
          %v1753 = vpack.c.b16 %v1737, %v1737
          %v1754 = vpack.c.b16 %v1738, %v1738
          %v1755 = vpack.c.b16 %v1739, %v1739
          %v1756 = vpack.c.b16 %v1740, %v1740
          %v1757 = vpack.c.b16 %v1741, %v1741
          %1774 = vst [vmem:[#allocation2] sm:$0xf] %v1742
          %1775 = vst [vmem:[#allocation2 + $0x4] sm:$0xf] %v1743
          %1776 = vst [vmem:[#allocation2 + $0x8] sm:$0xf] %v1744
          %1777 = vst [vmem:[#allocation2 + $0xc] sm:$0xf] %v1745
          %1778 = vst [vmem:[#allocation2 + $0x10] sm:$0xf] %v1746
          %1779 = vst [vmem:[#allocation2 + $0x14] sm:$0xf] %v1747
          %1780 = vst [vmem:[#allocation2 + $0x18] sm:$0xf] %v1748
          %1781 = vst [vmem:[#allocation2 + $0x1c] sm:$0xf] %v1749
          %1782 = vst [vmem:[#allocation2 + $0x20] sm:$0xf] %v1750
          %1783 = vst [vmem:[#allocation2 + $0x24] sm:$0xf] %v1751
          %1784 = vst [vmem:[#allocation2 + $0x28] sm:$0xf] %v1752
          %1785 = vst [vmem:[#allocation2 + $0x2c] sm:$0xf] %v1753
          %1786 = vst [vmem:[#allocation2 + $0x30] sm:$0xf] %v1754
          %1787 = vst [vmem:[#allocation2 + $0x34] sm:$0xf] %v1755
          %1788 = vst [vmem:[#allocation2 + $0x38] sm:$0xf] %v1756
          %1789 = vst [vmem:[#allocation2 + $0x3c] sm:$0xf] %v1757
        $region76: #{tpu_custom_call.1} parent=51 // pred_fallthru
          _
        %v1790 = vld [vmem:[%s381] sm:$0xff]
        %v1791 = vld [vmem:[%s381 + $0x8] sm:$0xff]
        %v1792 = vld [vmem:[%s381 + $0x10] sm:$0xff]
        %v1793 = vld [vmem:[%s381 + $0x18] sm:$0xff]
        %v1794 = vld [vmem:[%s381 + $0x20] sm:$0xff]
        %v1795 = vld [vmem:[%s381 + $0x28] sm:$0xff]
        %v1796 = vld [vmem:[%s381 + $0x30] sm:$0xff]
        %v1797 = vld [vmem:[%s381 + $0x38] sm:$0xff]
        %v1798 = vld [vmem:[%s381 + $0x40] sm:$0xff]
        %v1799 = vld [vmem:[%s381 + $0x48] sm:$0xff]
        %v1800 = vld [vmem:[%s381 + $0x50] sm:$0xff]
        %v1801 = vld [vmem:[%s381 + $0x58] sm:$0xff]
        %v1802 = vld [vmem:[%s381 + $0x60] sm:$0xff]
        %v1803 = vld [vmem:[%s381 + $0x68] sm:$0xff]
        %v1804 = vld [vmem:[%s381 + $0x70] sm:$0xff]
        %v1805 = vld [vmem:[%s381 + $0x78] sm:$0xff]
        %v1806 = vld [vmem:[#allocation2] sm:$0xf]
        %v1807 = vld [vmem:[#allocation2 + $0x4] sm:$0xf]
        %v1808 = vld [vmem:[#allocation2 + $0x8] sm:$0xf]
        %v1809 = vld [vmem:[#allocation2 + $0xc] sm:$0xf]
        %v1810 = vld [vmem:[#allocation2 + $0x10] sm:$0xf]
        %v1811 = vld [vmem:[#allocation2 + $0x14] sm:$0xf]
        %v1812 = vld [vmem:[#allocation2 + $0x18] sm:$0xf]
        %v1813 = vld [vmem:[#allocation2 + $0x1c] sm:$0xf]
        %v1814 = vld [vmem:[#allocation2 + $0x20] sm:$0xf]
        %v1815 = vld [vmem:[#allocation2 + $0x24] sm:$0xf]
        %v1816 = vld [vmem:[#allocation2 + $0x28] sm:$0xf]
        %v1817 = vld [vmem:[#allocation2 + $0x2c] sm:$0xf]
        %v1818 = vld [vmem:[#allocation2 + $0x30] sm:$0xf]
        %v1819 = vld [vmem:[#allocation2 + $0x34] sm:$0xf]
        %v1820 = vld [vmem:[#allocation2 + $0x38] sm:$0xf]
        %v1821 = vld [vmem:[#allocation2 + $0x3c] sm:$0xf]
        %v1838 = vunpack.c.l.b16 %v1806
        %v1839 = vunpack.c.l.b16 %v1807
        %v1840 = vunpack.c.l.b16 %v1808
        %v1841 = vunpack.c.l.b16 %v1809
        %v1842 = vunpack.c.l.b16 %v1810
        %v1843 = vunpack.c.l.b16 %v1811
        %v1844 = vunpack.c.l.b16 %v1812
        %v1845 = vunpack.c.l.b16 %v1813
        %v1846 = vunpack.c.l.b16 %v1814
        %v1847 = vunpack.c.l.b16 %v1815
        %v1848 = vunpack.c.l.b16 %v1816
        %v1849 = vunpack.c.l.b16 %v1817
        %v1850 = vunpack.c.l.b16 %v1818
        %v1851 = vunpack.c.l.b16 %v1819
        %v1852 = vunpack.c.l.b16 %v1820
        %v1853 = vunpack.c.l.b16 %v1821
        %v1854 = vpack.c.b16 %v1839, %v1838
        %v1855 = vpack.c.b16 %v1841, %v1840
        %v1856 = vpack.c.b16 %v1843, %v1842
        %v1857 = vpack.c.b16 %v1845, %v1844
        %v1858 = vpack.c.b16 %v1847, %v1846
        %v1859 = vpack.c.b16 %v1849, %v1848
        %v1860 = vpack.c.b16 %v1851, %v1850
        %v1861 = vpack.c.b16 %v1853, %v1852
        %v1886 = vunpack.c.l.b16 %v1790
        %v1887 = vunpack.c.h.b16 %v1790
        %v1888 = vunpack.c.l.b16 %v1791
        %v1889 = vunpack.c.h.b16 %v1791
        %v1890 = vunpack.c.l.b16 %v1792
        %v1891 = vunpack.c.h.b16 %v1792
        %v1892 = vunpack.c.l.b16 %v1793
        %v1893 = vunpack.c.h.b16 %v1793
        %v1894 = vunpack.c.l.b16 %v1794
        %v1895 = vunpack.c.h.b16 %v1794
        %v1896 = vunpack.c.l.b16 %v1795
        %v1897 = vunpack.c.h.b16 %v1795
        %v1898 = vunpack.c.l.b16 %v1796
        %v1899 = vunpack.c.h.b16 %v1796
        %v1900 = vunpack.c.l.b16 %v1797
        %v1901 = vunpack.c.h.b16 %v1797
        %v1902 = vunpack.c.l.b16 %v1798
        %v1903 = vunpack.c.h.b16 %v1798
        %v1904 = vunpack.c.l.b16 %v1799
        %v1905 = vunpack.c.h.b16 %v1799
        %v1906 = vunpack.c.l.b16 %v1800
        %v1907 = vunpack.c.h.b16 %v1800
        %v1908 = vunpack.c.l.b16 %v1801
        %v1909 = vunpack.c.h.b16 %v1801
        %v1910 = vunpack.c.l.b16 %v1802
        %v1911 = vunpack.c.h.b16 %v1802
        %v1912 = vunpack.c.l.b16 %v1803
        %v1913 = vunpack.c.h.b16 %v1803
        %v1914 = vunpack.c.l.b16 %v1804
        %v1915 = vunpack.c.h.b16 %v1804
        %v1916 = vunpack.c.l.b16 %v1805
        %v1917 = vunpack.c.h.b16 %v1805
        %v1918 = vpack.c.b16 %v1888, %v1886
        %v1919 = vpack.c.b16 %v1889, %v1887
        %v1920 = vpack.c.b16 %v1892, %v1890
        %v1921 = vpack.c.b16 %v1893, %v1891
        %v1922 = vpack.c.b16 %v1896, %v1894
        %v1923 = vpack.c.b16 %v1897, %v1895
        %v1924 = vpack.c.b16 %v1900, %v1898
        %v1925 = vpack.c.b16 %v1901, %v1899
        %v1926 = vpack.c.b16 %v1904, %v1902
        %v1927 = vpack.c.b16 %v1905, %v1903
        %v1928 = vpack.c.b16 %v1908, %v1906
        %v1929 = vpack.c.b16 %v1909, %v1907
        %v1930 = vpack.c.b16 %v1912, %v1910
        %v1931 = vpack.c.b16 %v1913, %v1911
        %v1932 = vpack.c.b16 %v1916, %v1914
        %v1933 = vpack.c.b16 %v1917, %v1915
        %1950 = vmatprep.subr.bf16.mxu0 %v1933
        %1951 = vmatpush1.bf16.msra.mxu0 %v1932
        %1952 = vmatprep.subr.bf16.mxu0 %v1931
        %1953 = vmatpush1.bf16.msra.mxu0 %v1930
        %1954 = vmatprep.subr.bf16.mxu0 %v1929
        %1955 = vmatpush1.bf16.msra.mxu0 %v1928
        %1956 = vmatprep.subr.bf16.mxu0 %v1927
        %1957 = vmatpush1.bf16.msra.mxu0 %v1926
        %1958 = vmatprep.subr.bf16.mxu0 %v1925
        %1959 = vmatpush1.bf16.msra.mxu0 %v1924
        %1960 = vmatprep.subr.bf16.mxu0 %v1923
        %1961 = vmatpush1.bf16.msra.mxu0 %v1922
        %1962 = vmatprep.subr.bf16.mxu0 %v1921
        %1963 = vmatpush1.bf16.msra.mxu0 %v1920
        %1964 = vmatprep.subr.bf16.mxu0 %v1919
        %1965 = vmatpush1.bf16.msra.mxu0 %v1918
        %1966 = vmatprep.subr.bf16.mxu0 0
        %1967 = vmatpush2.bf16.msra.mxu0 0
        %1968 = vmatprep.subr.bf16.mxu0 0
        %1969 = vmatpush2.bf16.msra.mxu0 0
        %1970 = vmatprep.subr.bf16.mxu0 0
        %1971 = vmatpush2.bf16.msra.mxu0 0
        %1972 = vmatprep.subr.bf16.mxu0 0
        %1973 = vmatpush2.bf16.msra.mxu0 0
        %1974 = vmatprep.subr.bf16.mxu0 0
        %1975 = vmatpush2.bf16.msra.mxu0 0
        %1976 = vmatprep.subr.bf16.mxu0 0
        %1977 = vmatpush2.bf16.msra.mxu0 0
        %1978 = vmatprep.subr.bf16.mxu0 0
        %1979 = vmatpush2.bf16.msra.mxu0 0
        %1980 = vmatprep.subr.bf16.mxu0 0
        %1981 = vmatpush2.bf16.msra.mxu0 0
        %1982 = vmatprep.mubr.bf16.mxu0 0
        %1983 = vmatmul.mubr.bf16.gmra.mxu0 %v1854
        %v1984 = vpop.f32.mrf.mxu0
        %v1985 = vadd.f32 0.0, %v1984
        %v1986 = vpop.f32.mrf.mxu0
        %v1987 = vadd.f32 0.0, %v1986
        %v1988 = vpop.f32.mrf.mxu0
        %v1989 = vadd.f32 0.0, %v1988
        %v1990 = vpop.f32.mrf.mxu0
        %v1991 = vadd.f32 0.0, %v1990
        %1992 = vmatprep.mubr.bf16.mxu0 0
        %1993 = vmatmul.mubr.bf16.gmra.mxu0 %v1855
        %v1994 = vpop.f32.mrf.mxu0
        %v1995 = vadd.f32 0.0, %v1994
        %v1996 = vpop.f32.mrf.mxu0
        %v1997 = vadd.f32 0.0, %v1996
        %v1998 = vpop.f32.mrf.mxu0
        %v1999 = vadd.f32 0.0, %v1998
        %v2000 = vpop.f32.mrf.mxu0
        %v2001 = vadd.f32 0.0, %v2000
        %2002 = vmatprep.mubr.bf16.mxu0 0
        %2003 = vmatmul.mubr.bf16.gmra.mxu0 %v1856
        %v2004 = vpop.f32.mrf.mxu0
        %v2005 = vadd.f32 0.0, %v2004
        %v2006 = vpop.f32.mrf.mxu0
        %v2007 = vadd.f32 0.0, %v2006
        %v2008 = vpop.f32.mrf.mxu0
        %v2009 = vadd.f32 0.0, %v2008
        %v2010 = vpop.f32.mrf.mxu0
        %v2011 = vadd.f32 0.0, %v2010
        %2012 = vmatprep.mubr.bf16.mxu0 0
        %2013 = vmatmul.mubr.bf16.gmra.mxu0 %v1857
        %v2014 = vpop.f32.mrf.mxu0
        %v2015 = vadd.f32 0.0, %v2014
        %v2016 = vpop.f32.mrf.mxu0
        %v2017 = vadd.f32 0.0, %v2016
        %v2018 = vpop.f32.mrf.mxu0
        %v2019 = vadd.f32 0.0, %v2018
        %v2020 = vpop.f32.mrf.mxu0
        %v2021 = vadd.f32 0.0, %v2020
        %2022 = vmatprep.mubr.bf16.mxu0 0
        %2023 = vmatmul.mubr.bf16.gmra.mxu0 %v1858
        %v2024 = vpop.f32.mrf.mxu0
        %v2025 = vadd.f32 0.0, %v2024
        %v2026 = vpop.f32.mrf.mxu0
        %v2027 = vadd.f32 0.0, %v2026
        %v2028 = vpop.f32.mrf.mxu0
        %v2029 = vadd.f32 0.0, %v2028
        %v2030 = vpop.f32.mrf.mxu0
        %v2031 = vadd.f32 0.0, %v2030
        %2032 = vmatprep.mubr.bf16.mxu0 0
        %2033 = vmatmul.mubr.bf16.gmra.mxu0 %v1859
        %v2034 = vpop.f32.mrf.mxu0
        %v2035 = vadd.f32 0.0, %v2034
        %v2036 = vpop.f32.mrf.mxu0
        %v2037 = vadd.f32 0.0, %v2036
        %v2038 = vpop.f32.mrf.mxu0
        %v2039 = vadd.f32 0.0, %v2038
        %v2040 = vpop.f32.mrf.mxu0
        %v2041 = vadd.f32 0.0, %v2040
        %2042 = vmatprep.mubr.bf16.mxu0 0
        %2043 = vmatmul.mubr.bf16.gmra.mxu0 %v1860
        %v2044 = vpop.f32.mrf.mxu0
        %v2045 = vadd.f32 0.0, %v2044
        %v2046 = vpop.f32.mrf.mxu0
        %v2047 = vadd.f32 0.0, %v2046
        %v2048 = vpop.f32.mrf.mxu0
        %v2049 = vadd.f32 0.0, %v2048
        %v2050 = vpop.f32.mrf.mxu0
        %v2051 = vadd.f32 0.0, %v2050
        %2052 = vmatprep.mubr.bf16.mxu0 0
        %2053 = vmatmul.mubr.bf16.gmra.mxu0 %v1861
        %v2054 = vpop.f32.mrf.mxu0
        %v2055 = vadd.f32 0.0, %v2054
        %v2056 = vpop.f32.mrf.mxu0
        %v2057 = vadd.f32 0.0, %v2056
        %v2058 = vpop.f32.mrf.mxu0
        %v2059 = vadd.f32 0.0, %v2058
        %v2060 = vpop.f32.mrf.mxu0
        %v2061 = vadd.f32 0.0, %v2060
        %2062 = vdwg.mxu0
        %2063 = vst [vmem:[%s418] sm:$0xff] %v1985
        %2064 = vst [vmem:[%s418 + $0x8] sm:$0xff] %v1987
        %2065 = vst [vmem:[%s418 + $0x10] sm:$0xff] %v1989
        %2066 = vst [vmem:[%s418 + $0x18] sm:$0xff] %v1991
        %2067 = vst [vmem:[%s418 + $0x20] sm:$0xff] %v1995
        %2068 = vst [vmem:[%s418 + $0x28] sm:$0xff] %v1997
        %2069 = vst [vmem:[%s418 + $0x30] sm:$0xff] %v1999
        %2070 = vst [vmem:[%s418 + $0x38] sm:$0xff] %v2001
        %2071 = vst [vmem:[%s418 + $0x40] sm:$0xff] %v2005
        %2072 = vst [vmem:[%s418 + $0x48] sm:$0xff] %v2007
        %2073 = vst [vmem:[%s418 + $0x50] sm:$0xff] %v2009
        %2074 = vst [vmem:[%s418 + $0x58] sm:$0xff] %v2011
        %2075 = vst [vmem:[%s418 + $0x60] sm:$0xff] %v2015
        %2076 = vst [vmem:[%s418 + $0x68] sm:$0xff] %v2017
        %2077 = vst [vmem:[%s418 + $0x70] sm:$0xff] %v2019
        %2078 = vst [vmem:[%s418 + $0x78] sm:$0xff] %v2021
        %2079 = vst [vmem:[%s418 + $0x80] sm:$0xff] %v2025
        %2080 = vst [vmem:[%s418 + $0x88] sm:$0xff] %v2027
        %2081 = vst [vmem:[%s418 + $0x90] sm:$0xff] %v2029
        %2082 = vst [vmem:[%s418 + $0x98] sm:$0xff] %v2031
        %2083 = vst [vmem:[%s418 + $0xa0] sm:$0xff] %v2035
        %2084 = vst [vmem:[%s418 + $0xa8] sm:$0xff] %v2037
        %2085 = vst [vmem:[%s418 + $0xb0] sm:$0xff] %v2039
        %2086 = vst [vmem:[%s418 + $0xb8] sm:$0xff] %v2041
        %2087 = vst [vmem:[%s418 + $0xc0] sm:$0xff] %v2045
        %2088 = vst [vmem:[%s418 + $0xc8] sm:$0xff] %v2047
        %2089 = vst [vmem:[%s418 + $0xd0] sm:$0xff] %v2049
        %2090 = vst [vmem:[%s418 + $0xd8] sm:$0xff] %v2051
        %2091 = vst [vmem:[%s418 + $0xe0] sm:$0xff] %v2055
        %2092 = vst [vmem:[%s418 + $0xe8] sm:$0xff] %v2057
        %2093 = vst [vmem:[%s418 + $0xf0] sm:$0xff] %v2059
        %2094 = vst [vmem:[%s418 + $0xf8] sm:$0xff] %v2061
        %s2095 = sand.u32 %s227, 1
        %s2096 = scalar_lea.sflag [#allocation5], %s2095
        %s2097 = sand.u32 %s227, 1
        %s2098 = smul.addr %s2097, 256
        %s2099 = scalar_lea.vmem [#allocation12], %s2098
        // Predicated region
        $region77: #{tpu_custom_call.1} parent=51 // pred_check
          %p2100 = pneg %p237
        $region78: #{tpu_custom_call.1} parent=51 // pred_check_branch
          %2102 = sbr.rel (%p2100) target = $region80
        $region79: #{tpu_custom_call.1} parent=51 // pred_region
          %s2103 = smul.u32 16, %s31
          %s2104 = smul.u32 2, %s32
          %s2106 = ssub.s32 4096, 4096
          %2107 = vsyncadd %s2096, %s2106
          %s2108 = smul.addr %s2103, 4
          %s2109 = sadd.s32 %s2104, %s2108
          %s2110 = smul.addr %s2109, 128
          %s2111 = scalar_lea.hbm %s8, %s2110
          %s2112 = sshll.u32 %s2099, 4
          %s2113 = int_to_ptr.vmem [resolvable:$true] %s2112
          %2118 = dma.vmem_to_hbm [thread:$0]  %s2113, 4096, %s2111, %s2096, 256, 512, 16
        $region80: #{tpu_custom_call.1} parent=51 // pred_fallthru
          _
      $region52: #{tpu_custom_call.1} parent=5 // pred_fallthru
        _
      %p2119 = scmp.le.s32.totalorder 2, %s22
      // Predicated region
      $region81: #{tpu_custom_call.1} parent=5 // pred_check
        %p2120 = pneg %p2119
      $region82: #{tpu_custom_call.1} parent=5 // pred_check_branch
        %2122 = sbr.rel (%p2120) target = $region84
      $region83: #{tpu_custom_call.1} parent=5 // pred_region
        %s2123 = ssub.s32 %s22, 2
        // Predicated region
        $region85: #{tpu_custom_call.1} parent=83 // pred_check
          %p2124 = pneg %p243
        $region86: #{tpu_custom_call.1} parent=83 // pred_check_branch
          %2126 = sbr.rel (%p2124) target = $region88
        $region87: #{tpu_custom_call.1} parent=83 // pred_region
          %s2127 = sand.u32 %s228, 1
          %s2128 = scalar_lea.sflag [#allocation5], %s2127
          %s2129 = sand.u32 %s228, 1
          %s2130 = smul.addr %s2129, 256
          %s2131 = scalar_lea.vmem [#allocation12], %s2130
          %2132 = dma.done %s2128, 4096
        $region88: #{tpu_custom_call.1} parent=83 // pred_fallthru
          _
      $region84: #{tpu_custom_call.1} parent=5 // pred_fallthru
        _
    $region6: #{tpu_custom_call.1} parent=1 // loop_footer
      %s26 = sadd.s32 1, %s22
    $region7: #{tpu_custom_call.1} parent=1 // loop_footer_branch
      %21 = sbr.rel target = $region3
    $region8: #{tpu_custom_call.1} parent=1 // loop_exit
      _
    %2133 = vsyncpa [#allocation4], 1
    %s2134 = scalar_lea.sflag [#allocation4], 1
    %2135 = vsyncpa %s2134, 1
    %2136 = vsyncpa [#allocation7], 1
    %2137 = vsyncpa [#allocation10], 1
    %2138 = vsyncpa [#allocation5], 1
    %s2139 = scalar_lea.sflag [#allocation5], 1
    %2140 = vsyncpa %s2139, 1

</llo_original>
